<compile_context>
chip_gen: v6e
topology: v6e:2x2x1
jax: 0.10.0
libtpu: 0.0.40
codegen_flags: <defaults>
</compile_context>

<pallas_src>
import jax
import jax.numpy as jnp
from jax.experimental import pallas as pl
from jax.experimental.pallas import tpu as pltpu

HIDDEN = 512
HEAD_PAD = 128   # lane-dense padded width of the fused V/A output head


def dueling_kernel(x_ref, w1_ref, b1_ref,
                   vw2_ref, vb2_ref, aw2_ref, ab2_ref,
                   w3_ref, b3_ref, out_ref):
    # ---- fused first layer: one (TB, D) @ (D, 2*HIDDEN) MXU pass ----
    x = x_ref[...].astype(jnp.bfloat16)
    h1 = jnp.dot(x, w1_ref[...], preferred_element_type=jnp.float32) + b1_ref[...]
    h1 = jnp.maximum(h1, 0.0)

    hv = h1[:, :HIDDEN].astype(jnp.bfloat16)   # V-stream hidden
    ha = h1[:, HIDDEN:].astype(jnp.bfloat16)   # A-stream hidden

    # ---- per-stream second layer (512x512 each) ----
    h2v = jnp.maximum(
        jnp.dot(hv, vw2_ref[...], preferred_element_type=jnp.float32) + vb2_ref[...],
        0.0)
    h2a = jnp.maximum(
        jnp.dot(ha, aw2_ref[...], preferred_element_type=jnp.float32) + ab2_ref[...],
        0.0)

    # ---- fused, lane-padded head: [h2v | h2a] @ (2*HIDDEN, 128) ----
    # w3 is block-laid-out: rows 0:512 feed column 0 (V), rows 512:1024 feed
    # columns 1:1+n_actions (A); remaining columns are zero padding.
    hg = jnp.concatenate([h2v.astype(jnp.bfloat16), h2a.astype(jnp.bfloat16)], axis=-1)
    out = jnp.dot(hg, w3_ref[...], preferred_element_type=jnp.float32) + b3_ref[...]
    out_ref[...] = out.astype(out_ref.dtype)


def pack_params(p):
    """Fuse / pad / bf16-cast the raw per-layer parameters for the kernel."""
    n_actions = p["aw3"].shape[1]
    assert n_actions + 1 <= HEAD_PAD, "n_actions must fit the padded head"

    w1 = jnp.concatenate([p["vw1"], p["aw1"]], axis=1).astype(jnp.bfloat16)  # (D, 1024)
    b1 = jnp.concatenate([p["vb1"], p["ab1"]], axis=1).astype(jnp.float32)   # (1, 1024)

    w3 = jnp.zeros((2 * HIDDEN, HEAD_PAD), jnp.float32)
    w3 = w3.at[:HIDDEN, 0:1].set(p["vw3"])
    w3 = w3.at[HIDDEN:, 1:1 + n_actions].set(p["aw3"])
    b3 = jnp.zeros((1, HEAD_PAD), jnp.float32)
    b3 = b3.at[:, 0:1].set(p["vb3"])
    b3 = b3.at[:, 1:1 + n_actions].set(p["ab3"])

    return {
        "w1": w1, "b1": b1,
        "vw2": p["vw2"].astype(jnp.bfloat16), "vb2": p["vb2"].astype(jnp.float32),
        "aw2": p["aw2"].astype(jnp.bfloat16), "ab2": p["ab2"].astype(jnp.float32),
        "w3": w3.astype(jnp.bfloat16), "b3": b3,
        "n_actions": n_actions,
    }


def dueling_ddqn_forward(state, packed):
    """state: (B, D) float32. packed: output of pack_params. Returns (V, A)."""
    B, D = state.shape
    n_actions = packed["n_actions"]
    H2 = 2 * HIDDEN

    # Batch tiling: one grid step for small batches, 128-row tiles for large
    # replay-buffer batches so activations pipeline while weights stay resident.
    if B > 128:
        TB = 128
    else:
        TB = max(8, ((B + 7) // 8) * 8)
    B_pad = ((B + TB - 1) // TB) * TB

    x = state.astype(jnp.float32)
    if B_pad != B:
        x = jnp.zeros((B_pad, D), jnp.float32).at[:B].set(x)

    def resident(shape):
        # Full-array block with a constant block index -> DMA'd once, stays in VMEM.
        return pl.BlockSpec(shape, lambda i: (0, 0))

    out = pl.pallas_call(
        dueling_kernel,
        out_shape=jax.ShapeDtypeStruct((B_pad, HEAD_PAD), jnp.float32),
        grid=(B_pad // TB,),
        in_specs=[
            pl.BlockSpec((TB, D), lambda i: (i, 0)),       # x tile
            resident((D, H2)), resident((1, H2)),          # fused layer 1
            resident((HIDDEN, HIDDEN)), resident((1, HIDDEN)),   # V layer 2
            resident((HIDDEN, HIDDEN)), resident((1, HIDDEN)),   # A layer 2
            resident((H2, HEAD_PAD)), resident((1, HEAD_PAD)),   # fused head
        ],
        out_specs=pl.BlockSpec((TB, HEAD_PAD), lambda i: (i, 0)),
        compiler_params=pltpu.CompilerParams(
            dimension_semantics=("parallel",)),
    )(x, packed["w1"], packed["b1"],
      packed["vw2"], packed["vb2"], packed["aw2"], packed["ab2"],
      packed["w3"], packed["b3"])

    v = out[:B, 0:1]
    a = out[:B, 1:1 + n_actions]
    return v, a


def init_params(key, input_dim, n_actions):
    """Deterministic synthetic parameters, shapes match the nn.Linear layers."""
    ks = jax.random.split(key, 12)

    def lin(kw, kb, fan_in, fan_out):
        scale = 1.0 / jnp.sqrt(fan_in)
        w = jax.random.uniform(kw, (fan_in, fan_out), jnp.float32, -scale, scale)
        b = jax.random.uniform(kb, (1, fan_out), jnp.float32, -scale, scale)
        return w, b

    p = {}
    p["vw1"], p["vb1"] = lin(ks[0], ks[1], input_dim, HIDDEN)
    p["vw2"], p["vb2"] = lin(ks[2], ks[3], HIDDEN, HIDDEN)
    p["vw3"], p["vb3"] = lin(ks[4], ks[5], HIDDEN, 1)
    p["aw1"], p["ab1"] = lin(ks[6], ks[7], input_dim, HIDDEN)
    p["aw2"], p["ab2"] = lin(ks[8], ks[9], HIDDEN, HIDDEN)
    p["aw3"], p["ab3"] = lin(ks[10], ks[11], HIDDEN, n_actions)
    return p


def reference_forward(state, p):
    def mlp(x, w1, b1, w2, b2, w3, b3):
        h = jnp.maximum(x @ w1 + b1, 0.0)
        h = jnp.maximum(h @ w2 + b2, 0.0)
        return h @ w3 + b3
    v = mlp(state, p["vw1"], p["vb1"], p["vw2"], p["vb2"], p["vw3"], p["vb3"])
    a = mlp(state, p["aw1"], p["ab1"], p["aw2"], p["ab2"], p["aw3"], p["ab3"])
    return v, a


if __name__ == "__main__":
    key = jax.random.PRNGKey(0)
    k_params, k_state = jax.random.split(key)

    batch = 8
    input_dim = 128      # *input_dims in the PyTorch ctor
    n_actions = 6

    params = init_params(k_params, input_dim, n_actions)
    packed = pack_params(params)
    state = jax.random.normal(k_state, (batch, input_dim), dtype=jnp.float32)

    v_out, a_out = dueling_ddqn_forward(state, packed)
    jax.block_until_ready((v_out, a_out))

    v_ref, a_ref = reference_forward(state, params)
    assert v_out.shape == (batch, 1) and a_out.shape == (batch, n_actions)
    # Tolerances relaxed because weights are stored in bf16 (f32 accumulation).
    assert jnp.allclose(v_out, v_ref, atol=2e-2, rtol=2e-2)
    assert jnp.allclose(a_out, a_ref, atol=2e-2, rtol=2e-2)

    print("KERNEL_OK")
</pallas_src>

<mosaic_0001>
module attributes {stable_mosaic.version = 11 : i64} {
  func.func @dueling_kernel(%arg0: i32, %arg1: memref<8x128xf32, #tpu.memory_space<vmem>>, %arg2: memref<128x1024xbf16, #tpu.memory_space<vmem>>, %arg3: memref<1x1024xf32, #tpu.memory_space<vmem>>, %arg4: memref<512x512xbf16, #tpu.memory_space<vmem>>, %arg5: memref<1x512xf32, #tpu.memory_space<vmem>>, %arg6: memref<512x512xbf16, #tpu.memory_space<vmem>>, %arg7: memref<1x512xf32, #tpu.memory_space<vmem>>, %arg8: memref<1024x128xbf16, #tpu.memory_space<vmem>>, %arg9: memref<1x128xf32, #tpu.memory_space<vmem>>, %arg10: memref<8x128xf32, #tpu.memory_space<vmem>>) attributes {dimension_semantics = [#tpu.dimension_semantics<parallel>], iteration_bounds = array<i64: 1>, scalar_prefetch = 0 : i64, scratch_operands = 0 : i64, tpu.core_type = #tpu.core_type<tc>, window_params = [{transform_indices = @transform_0, window_bounds = array<i64: 8, 128>}, {pipeline_mode = #tpu.pipeline_mode<synchronous>, transform_indices = @transform_1, window_bounds = array<i64: 128, 1024>}, {pipeline_mode = #tpu.pipeline_mode<synchronous>, transform_indices = @transform_2, window_bounds = array<i64: 1, 1024>}, {pipeline_mode = #tpu.pipeline_mode<synchronous>, transform_indices = @transform_3, window_bounds = array<i64: 512, 512>}, {pipeline_mode = #tpu.pipeline_mode<synchronous>, transform_indices = @transform_4, window_bounds = array<i64: 1, 512>}, {pipeline_mode = #tpu.pipeline_mode<synchronous>, transform_indices = @transform_5, window_bounds = array<i64: 512, 512>}, {pipeline_mode = #tpu.pipeline_mode<synchronous>, transform_indices = @transform_6, window_bounds = array<i64: 1, 512>}, {pipeline_mode = #tpu.pipeline_mode<synchronous>, transform_indices = @transform_7, window_bounds = array<i64: 1024, 128>}, {pipeline_mode = #tpu.pipeline_mode<synchronous>, transform_indices = @transform_8, window_bounds = array<i64: 1, 128>}, {transform_indices = @transform_9, window_bounds = array<i64: 8, 128>}]} {
    %c0 = arith.constant 0 : index
    %c0_0 = arith.constant 0 : index
    %0 = vector.load %arg1[%c0, %c0_0] : memref<8x128xf32, #tpu.memory_space<vmem>>, vector<8x128xf32>
    %1 = arith.truncf %0 : vector<8x128xf32> to vector<8x128xbf16>
    %c0_1 = arith.constant 0 : index
    %c0_2 = arith.constant 0 : index
    %2 = vector.load %arg2[%c0_1, %c0_2] : memref<128x1024xbf16, #tpu.memory_space<vmem>>, vector<128x1024xbf16>
    %cst = arith.constant dense<0.000000e+00> : vector<8x1024xf32>
    %3 = tpu.matmul %1, %2, %cst {dimension_numbers = #tpu.dot_dimension_numbers<[1], [0], [0], [1], [0, 0, 1, 1], [], []>} : vector<8x128xbf16>, vector<128x1024xbf16>, vector<8x1024xf32> -> vector<8x1024xf32>
    %c0_3 = arith.constant 0 : index
    %c0_4 = arith.constant 0 : index
    %4 = vector.load %arg3[%c0_3, %c0_4] : memref<1x1024xf32, #tpu.memory_space<vmem>>, vector<1x1024xf32>
    %5 = vector.broadcast %4 : vector<1x1024xf32> to vector<8x1024xf32>
    %6 = arith.addf %3, %5 : vector<8x1024xf32>
    %cst_5 = arith.constant 0.000000e+00 : f32
    %7 = vector.broadcast %cst_5 : f32 to vector<8x1024xf32>
    %8 = arith.maximumf %6, %7 : vector<8x1024xf32>
    %9 = vector.extract_strided_slice %8 {offsets = [0, 0], sizes = [8, 512], strides = [1, 1]} : vector<8x1024xf32> to vector<8x512xf32>
    %10 = arith.truncf %9 : vector<8x512xf32> to vector<8x512xbf16>
    %11 = vector.extract_strided_slice %8 {offsets = [0, 512], sizes = [8, 512], strides = [1, 1]} : vector<8x1024xf32> to vector<8x512xf32>
    %12 = arith.truncf %11 : vector<8x512xf32> to vector<8x512xbf16>
    %c0_6 = arith.constant 0 : index
    %c0_7 = arith.constant 0 : index
    %13 = vector.load %arg4[%c0_6, %c0_7] : memref<512x512xbf16, #tpu.memory_space<vmem>>, vector<512x512xbf16>
    %cst_8 = arith.constant dense<0.000000e+00> : vector<8x512xf32>
    %14 = tpu.matmul %10, %13, %cst_8 {dimension_numbers = #tpu.dot_dimension_numbers<[1], [0], [0], [1], [0, 0, 1, 1], [], []>} : vector<8x512xbf16>, vector<512x512xbf16>, vector<8x512xf32> -> vector<8x512xf32>
    %c0_9 = arith.constant 0 : index
    %c0_10 = arith.constant 0 : index
    %15 = vector.load %arg5[%c0_9, %c0_10] : memref<1x512xf32, #tpu.memory_space<vmem>>, vector<1x512xf32>
    %16 = vector.broadcast %15 : vector<1x512xf32> to vector<8x512xf32>
    %17 = arith.addf %14, %16 : vector<8x512xf32>
    %cst_11 = arith.constant 0.000000e+00 : f32
    %18 = vector.broadcast %cst_11 : f32 to vector<8x512xf32>
    %19 = arith.maximumf %17, %18 : vector<8x512xf32>
    %c0_12 = arith.constant 0 : index
    %c0_13 = arith.constant 0 : index
    %20 = vector.load %arg6[%c0_12, %c0_13] : memref<512x512xbf16, #tpu.memory_space<vmem>>, vector<512x512xbf16>
    %cst_14 = arith.constant dense<0.000000e+00> : vector<8x512xf32>
    %21 = tpu.matmul %12, %20, %cst_14 {dimension_numbers = #tpu.dot_dimension_numbers<[1], [0], [0], [1], [0, 0, 1, 1], [], []>} : vector<8x512xbf16>, vector<512x512xbf16>, vector<8x512xf32> -> vector<8x512xf32>
    %c0_15 = arith.constant 0 : index
    %c0_16 = arith.constant 0 : index
    %22 = vector.load %arg7[%c0_15, %c0_16] : memref<1x512xf32, #tpu.memory_space<vmem>>, vector<1x512xf32>
    %23 = vector.broadcast %22 : vector<1x512xf32> to vector<8x512xf32>
    %24 = arith.addf %21, %23 : vector<8x512xf32>
    %cst_17 = arith.constant 0.000000e+00 : f32
    %25 = vector.broadcast %cst_17 : f32 to vector<8x512xf32>
    %26 = arith.maximumf %24, %25 : vector<8x512xf32>
    %27 = arith.truncf %19 : vector<8x512xf32> to vector<8x512xbf16>
    %28 = arith.truncf %26 : vector<8x512xf32> to vector<8x512xbf16>
    %29 = tpu.concatenate %27, %28 in 1 : vector<8x512xbf16>, vector<8x512xbf16> -> vector<8x1024xbf16>
    %c0_18 = arith.constant 0 : index
    %c0_19 = arith.constant 0 : index
    %30 = vector.load %arg8[%c0_18, %c0_19] : memref<1024x128xbf16, #tpu.memory_space<vmem>>, vector<1024x128xbf16>
    %cst_20 = arith.constant dense<0.000000e+00> : vector<8x128xf32>
    %31 = tpu.matmul %29, %30, %cst_20 {dimension_numbers = #tpu.dot_dimension_numbers<[1], [0], [0], [1], [0, 0, 1, 1], [], []>} : vector<8x1024xbf16>, vector<1024x128xbf16>, vector<8x128xf32> -> vector<8x128xf32>
    %c0_21 = arith.constant 0 : index
    %c0_22 = arith.constant 0 : index
    %32 = vector.load %arg9[%c0_21, %c0_22] : memref<1x128xf32, #tpu.memory_space<vmem>>, vector<1x128xf32>
    %33 = vector.broadcast %32 : vector<1x128xf32> to vector<8x128xf32>
    %34 = arith.addf %31, %33 : vector<8x128xf32>
    %c0_23 = arith.constant 0 : index
    %c0_24 = arith.constant 0 : index
    %35 = vector.load %arg10[%c0_23, %c0_24] : memref<8x128xf32, #tpu.memory_space<vmem>>, vector<8x128xf32>
    tpu.vector_store %arg10[%c0_23, %c0_24], %34 {strides = array<i32>} : memref<8x128xf32, #tpu.memory_space<vmem>>, vector<8x128xf32>,
    return
  }
  func.func @transform_0(%arg0: i32) -> (i32, i32) {
    %c0_i32 = arith.constant 0 : i32
    %c0_i32_0 = arith.constant 0 : i32
    return %arg0, %c0_i32 : i32, i32
  }
  func.func @transform_1(%arg0: i32) -> (i32, i32) {
    %c0_i32 = arith.constant 0 : i32
    %c0_i32_0 = arith.constant 0 : i32
    %c0_i32_1 = arith.constant 0 : i32
    return %c0_i32, %c0_i32_0 : i32, i32
  }
  func.func @transform_2(%arg0: i32) -> (i32, i32) {
    %c0_i32 = arith.constant 0 : i32
    %c0_i32_0 = arith.constant 0 : i32
    %c0_i32_1 = arith.constant 0 : i32
    return %c0_i32, %c0_i32_0 : i32, i32
  }
  func.func @transform_3(%arg0: i32) -> (i32, i32) {
    %c0_i32 = arith.constant 0 : i32
    %c0_i32_0 = arith.constant 0 : i32
    %c0_i32_1 = arith.constant 0 : i32
    return %c0_i32, %c0_i32_0 : i32, i32
  }
  func.func @transform_4(%arg0: i32) -> (i32, i32) {
    %c0_i32 = arith.constant 0 : i32
    %c0_i32_0 = arith.constant 0 : i32
    %c0_i32_1 = arith.constant 0 : i32
    return %c0_i32, %c0_i32_0 : i32, i32
  }
  func.func @transform_5(%arg0: i32) -> (i32, i32) {
    %c0_i32 = arith.constant 0 : i32
    %c0_i32_0 = arith.constant 0 : i32
    %c0_i32_1 = arith.constant 0 : i32
    return %c0_i32, %c0_i32_0 : i32, i32
  }
  func.func @transform_6(%arg0: i32) -> (i32, i32) {
    %c0_i32 = arith.constant 0 : i32
    %c0_i32_0 = arith.constant 0 : i32
    %c0_i32_1 = arith.constant 0 : i32
    return %c0_i32, %c0_i32_0 : i32, i32
  }
  func.func @transform_7(%arg0: i32) -> (i32, i32) {
    %c0_i32 = arith.constant 0 : i32
    %c0_i32_0 = arith.constant 0 : i32
    %c0_i32_1 = arith.constant 0 : i32
    return %c0_i32, %c0_i32_0 : i32, i32
  }
  func.func @transform_8(%arg0: i32) -> (i32, i32) {
    %c0_i32 = arith.constant 0 : i32
    %c0_i32_0 = arith.constant 0 : i32
    %c0_i32_1 = arith.constant 0 : i32
    return %c0_i32, %c0_i32_0 : i32, i32
  }
  func.func @transform_9(%arg0: i32) -> (i32, i32) {
    %c0_i32 = arith.constant 0 : i32
    %c0_i32_0 = arith.constant 0 : i32
    return %arg0, %c0_i32 : i32, i32
  }
}

</mosaic_0001>

<llo_original>
// kernel: tpu_custom_call.1
$region0: #{tpu_custom_call.1}
  #allocation0 [shape = 'u32[]', space=smem, size = 0x4, offset = 0x4, fixed_abs, tag = 'smem constant byte address 0x4 - core index']
  #allocation1 [shape = 'u32[144,128]{1,0:T(1,128)}', space=vmem, size = 0x12000, scoped, tag = 'internal scratch']
  %s0 = inlined_call_operand.hbm [shape: f32[8,128], index: 0, kind: input, shape index: {}]
  %s1 = inlined_call_operand.hbm [shape: bf16[128,1024], index: 1, kind: input, shape index: {}]
  %s2 = inlined_call_operand.hbm [shape: f32[1,1024], index: 2, kind: input, shape index: {}]
  %s3 = inlined_call_operand.hbm [shape: bf16[512,512], index: 3, kind: input, shape index: {}]
  %s4 = inlined_call_operand.vmem [shape: f32[1,512], index: 4, kind: input, shape index: {}]
  %s5 = inlined_call_operand.hbm [shape: bf16[512,512], index: 5, kind: input, shape index: {}]
  %s6 = inlined_call_operand.vmem [shape: f32[1,512], index: 6, kind: input, shape index: {}]
  %s7 = inlined_call_operand.hbm [shape: bf16[1024,128], index: 7, kind: input, shape index: {}]
  %s8 = inlined_call_operand.vmem [shape: f32[1,128], index: 8, kind: input, shape index: {}]
  %s9 = inlined_call_operand.hbm [shape: f32[8,128], index: 9, kind: output, shape index: {}]
  %s10 = sld [smem:[#allocation0]]
  $region70: #{tpu_custom_call.1} parent=0
    _
  %s12 = ssub.s32 1, %s10
  %s13 = scalar_select 0, %s12, %s10
  $region1: #{tpu_custom_call.1} parent=0
    #allocation2 [shape = 'u8[4096]{0}', space=vmem, size = 0x1000, scoped, tag = 'input window, operand 0, single buffered']
    #allocation3 [shape = 's32[1]{0}', space=sflag, size = 0x4, scoped, tag = 'scoped memory for tpu_custom_call.1']
    #allocation4 [shape = 's32[1]{0}', space=sflag, size = 0x4, scoped, tag = 'scoped memory for tpu_custom_call.1']
    #allocation5 [shape = 'u8[262144]{0}', space=vmem, size = 0x40000, scoped, tag = 'input window, operand 1, single buffered']
    #allocation6 [shape = 's32[1]{0}', space=sflag, size = 0x4, scoped, tag = 'scoped memory for tpu_custom_call.1']
    #allocation7 [shape = 'u8[4096]{0}', space=vmem, size = 0x1000, scoped, tag = 'input window, operand 2, single buffered']
    #allocation8 [shape = 'u8[524288]{0}', space=vmem, size = 0x80000, scoped, tag = 'input window, operand 3, single buffered']
    #allocation9 [shape = 's32[1]{0}', space=sflag, size = 0x4, scoped, tag = 'scoped memory for tpu_custom_call.1']
    #allocation10 [shape = 'u8[524288]{0}', space=vmem, size = 0x80000, scoped, tag = 'input window, operand 5, single buffered']
    #allocation11 [shape = 'u8[262144]{0}', space=vmem, size = 0x40000, scoped, tag = 'input window, operand 7, single buffered']
    #allocation12 [shape = 's32[1]{0}', space=sflag, size = 0x4, scoped, tag = 'scoped memory for tpu_custom_call.1']
    #allocation13 [shape = 'u8[4096]{0}', space=vmem, size = 0x1000, scoped, tag = 'output window, operand 0, single buffered']
    %14 = vsyncpa [#allocation3], 0
    %15 = vsyncpa [#allocation6], 0
    %16 = vsyncpa [#allocation9], 0
    %17 = vsyncpa [#allocation12], 0
    %18 = vsyncpa [#allocation4], 0
    // Predicated region
    $region2: #{tpu_custom_call.1} parent=1 // pred_check
      _
    $region3: #{tpu_custom_call.1} parent=1 // pred_check_branch
      %20 = sbr.rel (0) target = $region5
    $region4: #{tpu_custom_call.1} parent=1 // pred_region
      %s22 = ssub.s32 128, 128
      %23 = vsyncadd [#allocation3], %s22
      %s25 = sshll.u32 [#allocation2], 4
      %s26 = int_to_ptr.vmem [resolvable:$true] %s25
      %28 = dma.hbm_to_vmem [thread:$0]  %s0, 128, %s26, [#allocation3]
    $region5: #{tpu_custom_call.1} parent=1 // pred_fallthru
      _
    // Predicated region
    $region6: #{tpu_custom_call.1} parent=1 // pred_check
      _
    $region7: #{tpu_custom_call.1} parent=1 // pred_check_branch
      %30 = sbr.rel (0) target = $region9
    $region8: #{tpu_custom_call.1} parent=1 // pred_region
      %s32 = ssub.s32 8192, 8192
      %33 = vsyncadd [#allocation6], %s32
      %s34 = sshll.u32 [#allocation5], 4
      %s35 = int_to_ptr.vmem [resolvable:$true] %s34
      %40 = dma.hbm_to_vmem [thread:$0]  %s1, 8192, %s35, [#allocation6], 512, 512, 32
    $region9: #{tpu_custom_call.1} parent=1 // pred_fallthru
      _
    // Predicated region
    $region10: #{tpu_custom_call.1} parent=1 // pred_check
      _
    $region11: #{tpu_custom_call.1} parent=1 // pred_check_branch
      %42 = sbr.rel (0) target = $region13
    $region12: #{tpu_custom_call.1} parent=1 // pred_region
      %s44 = ssub.s32 128, 128
      %45 = vsyncadd [#allocation6], %s44
      %s47 = sshll.u32 [#allocation7], 4
      %s48 = int_to_ptr.vmem [resolvable:$true] %s47
      %50 = dma.hbm_to_vmem [thread:$0]  %s2, 128, %s48, [#allocation6]
    $region13: #{tpu_custom_call.1} parent=1 // pred_fallthru
      _
    // Predicated region
    $region14: #{tpu_custom_call.1} parent=1 // pred_check
      _
    $region15: #{tpu_custom_call.1} parent=1 // pred_check_branch
      %52 = sbr.rel (0) target = $region17
    $region16: #{tpu_custom_call.1} parent=1 // pred_region
      %s54 = ssub.s32 16384, 16384
      %55 = vsyncadd [#allocation9], %s54
      %s56 = sshll.u32 [#allocation8], 4
      %s57 = int_to_ptr.vmem [resolvable:$true] %s56
      %62 = dma.hbm_to_vmem [thread:$0]  %s3, 16384, %s57, [#allocation9], 256, 256, 16
    $region17: #{tpu_custom_call.1} parent=1 // pred_fallthru
      _
    // Predicated region
    $region18: #{tpu_custom_call.1} parent=1 // pred_check
      _
    $region19: #{tpu_custom_call.1} parent=1 // pred_check_branch
      %64 = sbr.rel (0) target = $region21
    $region20: #{tpu_custom_call.1} parent=1 // pred_region
      _
    $region21: #{tpu_custom_call.1} parent=1 // pred_fallthru
      _
    // Predicated region
    $region22: #{tpu_custom_call.1} parent=1 // pred_check
      _
    $region23: #{tpu_custom_call.1} parent=1 // pred_check_branch
      %66 = sbr.rel (0) target = $region25
    $region24: #{tpu_custom_call.1} parent=1 // pred_region
      %s68 = ssub.s32 16384, 16384
      %69 = vsyncadd [#allocation9], %s68
      %s70 = sshll.u32 [#allocation10], 4
      %s71 = int_to_ptr.vmem [resolvable:$true] %s70
      %76 = dma.hbm_to_vmem [thread:$0]  %s5, 16384, %s71, [#allocation9], 256, 256, 16
    $region25: #{tpu_custom_call.1} parent=1 // pred_fallthru
      _
    // Predicated region
    $region26: #{tpu_custom_call.1} parent=1 // pred_check
      _
    $region27: #{tpu_custom_call.1} parent=1 // pred_check_branch
      %78 = sbr.rel (0) target = $region29
    $region28: #{tpu_custom_call.1} parent=1 // pred_region
      _
    $region29: #{tpu_custom_call.1} parent=1 // pred_fallthru
      _
    // Predicated region
    $region30: #{tpu_custom_call.1} parent=1 // pred_check
      _
    $region31: #{tpu_custom_call.1} parent=1 // pred_check_branch
      %80 = sbr.rel (0) target = $region33
    $region32: #{tpu_custom_call.1} parent=1 // pred_region
      %s82 = ssub.s32 8192, 8192
      %83 = vsyncadd [#allocation12], %s82
      %s84 = sshll.u32 [#allocation11], 4
      %s85 = int_to_ptr.vmem [resolvable:$true] %s84
      %90 = dma.hbm_to_vmem [thread:$0]  %s7, 8192, %s85, [#allocation12], 64, 64, 4
    $region33: #{tpu_custom_call.1} parent=1 // pred_fallthru
      _
    // Predicated region
    $region34: #{tpu_custom_call.1} parent=1 // pred_check
      _
    $region35: #{tpu_custom_call.1} parent=1 // pred_check_branch
      %92 = sbr.rel (0) target = $region37
    $region36: #{tpu_custom_call.1} parent=1 // pred_region
      _
    $region37: #{tpu_custom_call.1} parent=1 // pred_fallthru
      _
    // Predicated region
    $region38: #{tpu_custom_call.1} parent=1 // pred_check
      _
    $region39: #{tpu_custom_call.1} parent=1 // pred_check_branch
      %94 = sbr.rel (0) target = $region41
    $region40: #{tpu_custom_call.1} parent=1 // pred_region
      %95 = dma.done [#allocation3], 128
    $region41: #{tpu_custom_call.1} parent=1 // pred_fallthru
      _
    // Predicated region
    $region42: #{tpu_custom_call.1} parent=1 // pred_check
      _
    $region43: #{tpu_custom_call.1} parent=1 // pred_check_branch
      %97 = sbr.rel (0) target = $region45
    $region44: #{tpu_custom_call.1} parent=1 // pred_region
      %98 = dma.done [#allocation6], 8192
    $region45: #{tpu_custom_call.1} parent=1 // pred_fallthru
      _
    // Predicated region
    $region46: #{tpu_custom_call.1} parent=1 // pred_check
      _
    $region47: #{tpu_custom_call.1} parent=1 // pred_check_branch
      %100 = sbr.rel (0) target = $region49
    $region48: #{tpu_custom_call.1} parent=1 // pred_region
      %101 = dma.done [#allocation6], 128
    $region49: #{tpu_custom_call.1} parent=1 // pred_fallthru
      _
    // Predicated region
    $region50: #{tpu_custom_call.1} parent=1 // pred_check
      _
    $region51: #{tpu_custom_call.1} parent=1 // pred_check_branch
      %103 = sbr.rel (0) target = $region53
    $region52: #{tpu_custom_call.1} parent=1 // pred_region
      %104 = dma.done [#allocation9], 16384
    $region53: #{tpu_custom_call.1} parent=1 // pred_fallthru
      _
    // Predicated region
    $region54: #{tpu_custom_call.1} parent=1 // pred_check
      _
    $region55: #{tpu_custom_call.1} parent=1 // pred_check_branch
      %106 = sbr.rel (0) target = $region57
    $region56: #{tpu_custom_call.1} parent=1 // pred_region
      %107 = dma.done [#allocation9], 16384
    $region57: #{tpu_custom_call.1} parent=1 // pred_fallthru
      _
    // Predicated region
    $region58: #{tpu_custom_call.1} parent=1 // pred_check
      _
    $region59: #{tpu_custom_call.1} parent=1 // pred_check_branch
      %109 = sbr.rel (0) target = $region61
    $region60: #{tpu_custom_call.1} parent=1 // pred_region
      %110 = dma.done [#allocation12], 8192
    $region61: #{tpu_custom_call.1} parent=1 // pred_fallthru
      _
    %v112 = vld [vmem:[#allocation2] sm:$0xff]
    %v113 = vpack.c.bf16 %v112, %v112
    %v114 = vld [vmem:[#allocation5] sm:$0xff]
    %v115 = vld [vmem:[#allocation5 + $0x8] sm:$0xff]
    %v116 = vld [vmem:[#allocation5 + $0x10] sm:$0xff]
    %v117 = vld [vmem:[#allocation5 + $0x18] sm:$0xff]
    %v118 = vld [vmem:[#allocation5 + $0x20] sm:$0xff]
    %v119 = vld [vmem:[#allocation5 + $0x28] sm:$0xff]
    %v120 = vld [vmem:[#allocation5 + $0x30] sm:$0xff]
    %v121 = vld [vmem:[#allocation5 + $0x38] sm:$0xff]
    %v122 = vld [vmem:[#allocation5 + $0x40] sm:$0xff]
    %v123 = vld [vmem:[#allocation5 + $0x48] sm:$0xff]
    %v124 = vld [vmem:[#allocation5 + $0x50] sm:$0xff]
    %v125 = vld [vmem:[#allocation5 + $0x58] sm:$0xff]
    %v126 = vld [vmem:[#allocation5 + $0x60] sm:$0xff]
    %v127 = vld [vmem:[#allocation5 + $0x68] sm:$0xff]
    %v128 = vld [vmem:[#allocation5 + $0x70] sm:$0xff]
    %v129 = vld [vmem:[#allocation5 + $0x78] sm:$0xff]
    %v130 = vld [vmem:[#allocation5 + $0x80] sm:$0xff]
    %v131 = vld [vmem:[#allocation5 + $0x88] sm:$0xff]
    %v132 = vld [vmem:[#allocation5 + $0x90] sm:$0xff]
    %v133 = vld [vmem:[#allocation5 + $0x98] sm:$0xff]
    %v134 = vld [vmem:[#allocation5 + $0xa0] sm:$0xff]
    %v135 = vld [vmem:[#allocation5 + $0xa8] sm:$0xff]
    %v136 = vld [vmem:[#allocation5 + $0xb0] sm:$0xff]
    %v137 = vld [vmem:[#allocation5 + $0xb8] sm:$0xff]
    %v138 = vld [vmem:[#allocation5 + $0xc0] sm:$0xff]
    %v139 = vld [vmem:[#allocation5 + $0xc8] sm:$0xff]
    %v140 = vld [vmem:[#allocation5 + $0xd0] sm:$0xff]
    %v141 = vld [vmem:[#allocation5 + $0xd8] sm:$0xff]
    %v142 = vld [vmem:[#allocation5 + $0xe0] sm:$0xff]
    %v143 = vld [vmem:[#allocation5 + $0xe8] sm:$0xff]
    %v144 = vld [vmem:[#allocation5 + $0xf0] sm:$0xff]
    %v145 = vld [vmem:[#allocation5 + $0xf8] sm:$0xff]
    %v146 = vld [vmem:[#allocation5 + $0x100] sm:$0xff]
    %v147 = vld [vmem:[#allocation5 + $0x108] sm:$0xff]
    %v148 = vld [vmem:[#allocation5 + $0x110] sm:$0xff]
    %v149 = vld [vmem:[#allocation5 + $0x118] sm:$0xff]
    %v150 = vld [vmem:[#allocation5 + $0x120] sm:$0xff]
    %v151 = vld [vmem:[#allocation5 + $0x128] sm:$0xff]
    %v152 = vld [vmem:[#allocation5 + $0x130] sm:$0xff]
    %v153 = vld [vmem:[#allocation5 + $0x138] sm:$0xff]
    %v154 = vld [vmem:[#allocation5 + $0x140] sm:$0xff]
    %v155 = vld [vmem:[#allocation5 + $0x148] sm:$0xff]
    %v156 = vld [vmem:[#allocation5 + $0x150] sm:$0xff]
    %v157 = vld [vmem:[#allocation5 + $0x158] sm:$0xff]
    %v158 = vld [vmem:[#allocation5 + $0x160] sm:$0xff]
    %v159 = vld [vmem:[#allocation5 + $0x168] sm:$0xff]
    %v160 = vld [vmem:[#allocation5 + $0x170] sm:$0xff]
    %v161 = vld [vmem:[#allocation5 + $0x178] sm:$0xff]
    %v162 = vld [vmem:[#allocation5 + $0x180] sm:$0xff]
    %v163 = vld [vmem:[#allocation5 + $0x188] sm:$0xff]
    %v164 = vld [vmem:[#allocation5 + $0x190] sm:$0xff]
    %v165 = vld [vmem:[#allocation5 + $0x198] sm:$0xff]
    %v166 = vld [vmem:[#allocation5 + $0x1a0] sm:$0xff]
    %v167 = vld [vmem:[#allocation5 + $0x1a8] sm:$0xff]
    %v168 = vld [vmem:[#allocation5 + $0x1b0] sm:$0xff]
    %v169 = vld [vmem:[#allocation5 + $0x1b8] sm:$0xff]
    %v170 = vld [vmem:[#allocation5 + $0x1c0] sm:$0xff]
    %v171 = vld [vmem:[#allocation5 + $0x1c8] sm:$0xff]
    %v172 = vld [vmem:[#allocation5 + $0x1d0] sm:$0xff]
    %v173 = vld [vmem:[#allocation5 + $0x1d8] sm:$0xff]
    %v174 = vld [vmem:[#allocation5 + $0x1e0] sm:$0xff]
    %v175 = vld [vmem:[#allocation5 + $0x1e8] sm:$0xff]
    %v176 = vld [vmem:[#allocation5 + $0x1f0] sm:$0xff]
    %v177 = vld [vmem:[#allocation5 + $0x1f8] sm:$0xff]
    %v178 = vld [vmem:[#allocation7] sm:$0xff]
    %v180 = vlaneseq
    %v181 = vshrl.u32 %v180, 7
    %v182 = vsub.s32 0, %v181
    %v183 = vrot.slane %v178, %v182
    %v184 = vlaneseq
    %v185 = vshrl.u32 %v184, 7
    %v186 = vsub.s32 1, %v185
    %v187 = vrot.slane %v178, %v186
    %v188 = vlaneseq
    %v189 = vshrl.u32 %v188, 7
    %v190 = vsub.s32 2, %v189
    %v191 = vrot.slane %v178, %v190
    %v192 = vlaneseq
    %v193 = vshrl.u32 %v192, 7
    %v194 = vsub.s32 3, %v193
    %v195 = vrot.slane %v178, %v194
    %v196 = vlaneseq
    %v197 = vshrl.u32 %v196, 7
    %v198 = vsub.s32 4, %v197
    %v199 = vrot.slane %v178, %v198
    %v200 = vlaneseq
    %v201 = vshrl.u32 %v200, 7
    %v202 = vsub.s32 5, %v201
    %v203 = vrot.slane %v178, %v202
    %v204 = vlaneseq
    %v205 = vshrl.u32 %v204, 7
    %v206 = vsub.s32 6, %v205
    %v207 = vrot.slane %v178, %v206
    %v208 = vlaneseq
    %v209 = vshrl.u32 %v208, 7
    %v210 = vsub.s32 7, %v209
    %v211 = vrot.slane %v178, %v210
    %v284 = vunpack.c.l.b16 %v114
    %v285 = vunpack.c.h.b16 %v114
    %v286 = vunpack.c.l.b16 %v115
    %v287 = vunpack.c.h.b16 %v115
    %v288 = vunpack.c.l.b16 %v116
    %v289 = vunpack.c.h.b16 %v116
    %v290 = vunpack.c.l.b16 %v117
    %v291 = vunpack.c.h.b16 %v117
    %v292 = vunpack.c.l.b16 %v118
    %v293 = vunpack.c.h.b16 %v118
    %v294 = vunpack.c.l.b16 %v119
    %v295 = vunpack.c.h.b16 %v119
    %v296 = vunpack.c.l.b16 %v120
    %v297 = vunpack.c.h.b16 %v120
    %v298 = vunpack.c.l.b16 %v121
    %v299 = vunpack.c.h.b16 %v121
    %v300 = vunpack.c.l.b16 %v122
    %v301 = vunpack.c.h.b16 %v122
    %v302 = vunpack.c.l.b16 %v123
    %v303 = vunpack.c.h.b16 %v123
    %v304 = vunpack.c.l.b16 %v124
    %v305 = vunpack.c.h.b16 %v124
    %v306 = vunpack.c.l.b16 %v125
    %v307 = vunpack.c.h.b16 %v125
    %v308 = vunpack.c.l.b16 %v126
    %v309 = vunpack.c.h.b16 %v126
    %v310 = vunpack.c.l.b16 %v127
    %v311 = vunpack.c.h.b16 %v127
    %v312 = vunpack.c.l.b16 %v128
    %v313 = vunpack.c.h.b16 %v128
    %v314 = vunpack.c.l.b16 %v129
    %v315 = vunpack.c.h.b16 %v129
    %v316 = vunpack.c.l.b16 %v130
    %v317 = vunpack.c.h.b16 %v130
    %v318 = vunpack.c.l.b16 %v131
    %v319 = vunpack.c.h.b16 %v131
    %v320 = vunpack.c.l.b16 %v132
    %v321 = vunpack.c.h.b16 %v132
    %v322 = vunpack.c.l.b16 %v133
    %v323 = vunpack.c.h.b16 %v133
    %v324 = vunpack.c.l.b16 %v134
    %v325 = vunpack.c.h.b16 %v134
    %v326 = vunpack.c.l.b16 %v135
    %v327 = vunpack.c.h.b16 %v135
    %v328 = vunpack.c.l.b16 %v136
    %v329 = vunpack.c.h.b16 %v136
    %v330 = vunpack.c.l.b16 %v137
    %v331 = vunpack.c.h.b16 %v137
    %v332 = vunpack.c.l.b16 %v138
    %v333 = vunpack.c.h.b16 %v138
    %v334 = vunpack.c.l.b16 %v139
    %v335 = vunpack.c.h.b16 %v139
    %v336 = vunpack.c.l.b16 %v140
    %v337 = vunpack.c.h.b16 %v140
    %v338 = vunpack.c.l.b16 %v141
    %v339 = vunpack.c.h.b16 %v141
    %v340 = vunpack.c.l.b16 %v142
    %v341 = vunpack.c.h.b16 %v142
    %v342 = vunpack.c.l.b16 %v143
    %v343 = vunpack.c.h.b16 %v143
    %v344 = vunpack.c.l.b16 %v144
    %v345 = vunpack.c.h.b16 %v144
    %v346 = vunpack.c.l.b16 %v145
    %v347 = vunpack.c.h.b16 %v145
    %v348 = vunpack.c.l.b16 %v146
    %v349 = vunpack.c.h.b16 %v146
    %v350 = vunpack.c.l.b16 %v147
    %v351 = vunpack.c.h.b16 %v147
    %v352 = vunpack.c.l.b16 %v148
    %v353 = vunpack.c.h.b16 %v148
    %v354 = vunpack.c.l.b16 %v149
    %v355 = vunpack.c.h.b16 %v149
    %v356 = vunpack.c.l.b16 %v150
    %v357 = vunpack.c.h.b16 %v150
    %v358 = vunpack.c.l.b16 %v151
    %v359 = vunpack.c.h.b16 %v151
    %v360 = vunpack.c.l.b16 %v152
    %v361 = vunpack.c.h.b16 %v152
    %v362 = vunpack.c.l.b16 %v153
    %v363 = vunpack.c.h.b16 %v153
    %v364 = vunpack.c.l.b16 %v154
    %v365 = vunpack.c.h.b16 %v154
    %v366 = vunpack.c.l.b16 %v155
    %v367 = vunpack.c.h.b16 %v155
    %v368 = vunpack.c.l.b16 %v156
    %v369 = vunpack.c.h.b16 %v156
    %v370 = vunpack.c.l.b16 %v157
    %v371 = vunpack.c.h.b16 %v157
    %v372 = vunpack.c.l.b16 %v158
    %v373 = vunpack.c.h.b16 %v158
    %v374 = vunpack.c.l.b16 %v159
    %v375 = vunpack.c.h.b16 %v159
    %v376 = vunpack.c.l.b16 %v160
    %v377 = vunpack.c.h.b16 %v160
    %v378 = vunpack.c.l.b16 %v161
    %v379 = vunpack.c.h.b16 %v161
    %v380 = vunpack.c.l.b16 %v162
    %v381 = vunpack.c.h.b16 %v162
    %v382 = vunpack.c.l.b16 %v163
    %v383 = vunpack.c.h.b16 %v163
    %v384 = vunpack.c.l.b16 %v164
    %v385 = vunpack.c.h.b16 %v164
    %v386 = vunpack.c.l.b16 %v165
    %v387 = vunpack.c.h.b16 %v165
    %v388 = vunpack.c.l.b16 %v166
    %v389 = vunpack.c.h.b16 %v166
    %v390 = vunpack.c.l.b16 %v167
    %v391 = vunpack.c.h.b16 %v167
    %v392 = vunpack.c.l.b16 %v168
    %v393 = vunpack.c.h.b16 %v168
    %v394 = vunpack.c.l.b16 %v169
    %v395 = vunpack.c.h.b16 %v169
    %v396 = vunpack.c.l.b16 %v170
    %v397 = vunpack.c.h.b16 %v170
    %v398 = vunpack.c.l.b16 %v171
    %v399 = vunpack.c.h.b16 %v171
    %v400 = vunpack.c.l.b16 %v172
    %v401 = vunpack.c.h.b16 %v172
    %v402 = vunpack.c.l.b16 %v173
    %v403 = vunpack.c.h.b16 %v173
    %v404 = vunpack.c.l.b16 %v174
    %v405 = vunpack.c.h.b16 %v174
    %v406 = vunpack.c.l.b16 %v175
    %v407 = vunpack.c.h.b16 %v175
    %v408 = vunpack.c.l.b16 %v176
    %v409 = vunpack.c.h.b16 %v176
    %v410 = vunpack.c.l.b16 %v177
    %v411 = vunpack.c.h.b16 %v177
    %v412 = vpack.c.b16 %v292, %v284
    %v413 = vpack.c.b16 %v293, %v285
    %v414 = vpack.c.b16 %v294, %v286
    %v415 = vpack.c.b16 %v295, %v287
    %v416 = vpack.c.b16 %v296, %v288
    %v417 = vpack.c.b16 %v297, %v289
    %v418 = vpack.c.b16 %v298, %v290
    %v419 = vpack.c.b16 %v299, %v291
    %v420 = vpack.c.b16 %v308, %v300
    %v421 = vpack.c.b16 %v309, %v301
    %v422 = vpack.c.b16 %v310, %v302
    %v423 = vpack.c.b16 %v311, %v303
    %v424 = vpack.c.b16 %v312, %v304
    %v425 = vpack.c.b16 %v313, %v305
    %v426 = vpack.c.b16 %v314, %v306
    %v427 = vpack.c.b16 %v315, %v307
    %v428 = vpack.c.b16 %v324, %v316
    %v429 = vpack.c.b16 %v325, %v317
    %v430 = vpack.c.b16 %v326, %v318
    %v431 = vpack.c.b16 %v327, %v319
    %v432 = vpack.c.b16 %v328, %v320
    %v433 = vpack.c.b16 %v329, %v321
    %v434 = vpack.c.b16 %v330, %v322
    %v435 = vpack.c.b16 %v331, %v323
    %v436 = vpack.c.b16 %v340, %v332
    %v437 = vpack.c.b16 %v341, %v333
    %v438 = vpack.c.b16 %v342, %v334
    %v439 = vpack.c.b16 %v343, %v335
    %v440 = vpack.c.b16 %v344, %v336
    %v441 = vpack.c.b16 %v345, %v337
    %v442 = vpack.c.b16 %v346, %v338
    %v443 = vpack.c.b16 %v347, %v339
    %v444 = vpack.c.b16 %v356, %v348
    %v445 = vpack.c.b16 %v357, %v349
    %v446 = vpack.c.b16 %v358, %v350
    %v447 = vpack.c.b16 %v359, %v351
    %v448 = vpack.c.b16 %v360, %v352
    %v449 = vpack.c.b16 %v361, %v353
    %v450 = vpack.c.b16 %v362, %v354
    %v451 = vpack.c.b16 %v363, %v355
    %v452 = vpack.c.b16 %v372, %v364
    %v453 = vpack.c.b16 %v373, %v365
    %v454 = vpack.c.b16 %v374, %v366
    %v455 = vpack.c.b16 %v375, %v367
    %v456 = vpack.c.b16 %v376, %v368
    %v457 = vpack.c.b16 %v377, %v369
    %v458 = vpack.c.b16 %v378, %v370
    %v459 = vpack.c.b16 %v379, %v371
    %v460 = vpack.c.b16 %v388, %v380
    %v461 = vpack.c.b16 %v389, %v381
    %v462 = vpack.c.b16 %v390, %v382
    %v463 = vpack.c.b16 %v391, %v383
    %v464 = vpack.c.b16 %v392, %v384
    %v465 = vpack.c.b16 %v393, %v385
    %v466 = vpack.c.b16 %v394, %v386
    %v467 = vpack.c.b16 %v395, %v387
    %v468 = vpack.c.b16 %v404, %v396
    %v469 = vpack.c.b16 %v405, %v397
    %v470 = vpack.c.b16 %v406, %v398
    %v471 = vpack.c.b16 %v407, %v399
    %v472 = vpack.c.b16 %v408, %v400
    %v473 = vpack.c.b16 %v409, %v401
    %v474 = vpack.c.b16 %v410, %v402
    %v475 = vpack.c.b16 %v411, %v403
    %540 = vmatprep.subr.bf16.mxu0 %v469
    %541 = vmatpush1.bf16.msra.mxu0 %v468
    %542 = vmatprep.subr.bf16.mxu0 %v461
    %543 = vmatpush1.bf16.msra.mxu0 %v460
    %544 = vmatprep.subr.bf16.mxu0 %v453
    %545 = vmatpush1.bf16.msra.mxu0 %v452
    %546 = vmatprep.subr.bf16.mxu0 %v445
    %547 = vmatpush1.bf16.msra.mxu0 %v444
    %548 = vmatprep.subr.bf16.mxu0 %v437
    %549 = vmatpush1.bf16.msra.mxu0 %v436
    %550 = vmatprep.subr.bf16.mxu0 %v429
    %551 = vmatpush1.bf16.msra.mxu0 %v428
    %552 = vmatprep.subr.bf16.mxu0 %v421
    %553 = vmatpush1.bf16.msra.mxu0 %v420
    %554 = vmatprep.subr.bf16.mxu0 %v413
    %555 = vmatpush1.bf16.msra.mxu0 %v412
    %556 = vmatprep.subr.bf16.mxu0 0
    %557 = vmatpush2.bf16.msra.mxu0 0
    %558 = vmatprep.subr.bf16.mxu0 0
    %559 = vmatpush2.bf16.msra.mxu0 0
    %560 = vmatprep.subr.bf16.mxu0 0
    %561 = vmatpush2.bf16.msra.mxu0 0
    %562 = vmatprep.subr.bf16.mxu0 0
    %563 = vmatpush2.bf16.msra.mxu0 0
    %564 = vmatprep.subr.bf16.mxu0 0
    %565 = vmatpush2.bf16.msra.mxu0 0
    %566 = vmatprep.subr.bf16.mxu0 0
    %567 = vmatpush2.bf16.msra.mxu0 0
    %568 = vmatprep.subr.bf16.mxu0 0
    %569 = vmatpush2.bf16.msra.mxu0 0
    %570 = vmatprep.subr.bf16.mxu0 0
    %571 = vmatpush2.bf16.msra.mxu0 0
    %572 = vmatprep.mubr.bf16.mxu0 0
    %573 = vmatmul.mubr.bf16.gmra.mxu0 %v113
    %v574 = vpop.f32.mrf.mxu0
    %v575 = vadd.f32 %v183, %v574
    %v576 = vpop.f32.mrf.mxu0
    %v577 = vadd.f32 %v187, %v576
    %v578 = vpop.f32.mrf.mxu0
    %v579 = vpop.f32.mrf.mxu0
    %580 = vdwg.mxu0
    %581 = vmatprep.subr.bf16.mxu0 %v471
    %582 = vmatpush1.bf16.msra.mxu0 %v470
    %583 = vmatprep.subr.bf16.mxu0 %v463
    %584 = vmatpush1.bf16.msra.mxu0 %v462
    %585 = vmatprep.subr.bf16.mxu0 %v455
    %586 = vmatpush1.bf16.msra.mxu0 %v454
    %587 = vmatprep.subr.bf16.mxu0 %v447
    %588 = vmatpush1.bf16.msra.mxu0 %v446
    %589 = vmatprep.subr.bf16.mxu0 %v439
    %590 = vmatpush1.bf16.msra.mxu0 %v438
    %591 = vmatprep.subr.bf16.mxu0 %v431
    %592 = vmatpush1.bf16.msra.mxu0 %v430
    %593 = vmatprep.subr.bf16.mxu0 %v423
    %594 = vmatpush1.bf16.msra.mxu0 %v422
    %595 = vmatprep.subr.bf16.mxu0 %v415
    %596 = vmatpush1.bf16.msra.mxu0 %v414
    %597 = vmatprep.subr.bf16.mxu0 0
    %598 = vmatpush2.bf16.msra.mxu0 0
    %599 = vmatprep.subr.bf16.mxu0 0
    %600 = vmatpush2.bf16.msra.mxu0 0
    %601 = vmatprep.subr.bf16.mxu0 0
    %602 = vmatpush2.bf16.msra.mxu0 0
    %603 = vmatprep.subr.bf16.mxu0 0
    %604 = vmatpush2.bf16.msra.mxu0 0
    %605 = vmatprep.subr.bf16.mxu0 0
    %606 = vmatpush2.bf16.msra.mxu0 0
    %607 = vmatprep.subr.bf16.mxu0 0
    %608 = vmatpush2.bf16.msra.mxu0 0
    %609 = vmatprep.subr.bf16.mxu0 0
    %610 = vmatpush2.bf16.msra.mxu0 0
    %611 = vmatprep.subr.bf16.mxu0 0
    %612 = vmatpush2.bf16.msra.mxu0 0
    %613 = vmatprep.mubr.bf16.mxu0 0
    %614 = vmatmul.mubr.bf16.gmra.mxu0 %v113
    %v615 = vpop.f32.mrf.mxu0
    %v616 = vadd.f32 %v191, %v615
    %v617 = vpop.f32.mrf.mxu0
    %v618 = vadd.f32 %v195, %v617
    %v619 = vpop.f32.mrf.mxu0
    %v620 = vpop.f32.mrf.mxu0
    %621 = vdwg.mxu0
    %622 = vmatprep.subr.bf16.mxu0 %v473
    %623 = vmatpush1.bf16.msra.mxu0 %v472
    %624 = vmatprep.subr.bf16.mxu0 %v465
    %625 = vmatpush1.bf16.msra.mxu0 %v464
    %626 = vmatprep.subr.bf16.mxu0 %v457
    %627 = vmatpush1.bf16.msra.mxu0 %v456
    %628 = vmatprep.subr.bf16.mxu0 %v449
    %629 = vmatpush1.bf16.msra.mxu0 %v448
    %630 = vmatprep.subr.bf16.mxu0 %v441
    %631 = vmatpush1.bf16.msra.mxu0 %v440
    %632 = vmatprep.subr.bf16.mxu0 %v433
    %633 = vmatpush1.bf16.msra.mxu0 %v432
    %634 = vmatprep.subr.bf16.mxu0 %v425
    %635 = vmatpush1.bf16.msra.mxu0 %v424
    %636 = vmatprep.subr.bf16.mxu0 %v417
    %637 = vmatpush1.bf16.msra.mxu0 %v416
    %638 = vmatprep.subr.bf16.mxu0 0
    %639 = vmatpush2.bf16.msra.mxu0 0
    %640 = vmatprep.subr.bf16.mxu0 0
    %641 = vmatpush2.bf16.msra.mxu0 0
    %642 = vmatprep.subr.bf16.mxu0 0
    %643 = vmatpush2.bf16.msra.mxu0 0
    %644 = vmatprep.subr.bf16.mxu0 0
    %645 = vmatpush2.bf16.msra.mxu0 0
    %646 = vmatprep.subr.bf16.mxu0 0
    %647 = vmatpush2.bf16.msra.mxu0 0
    %648 = vmatprep.subr.bf16.mxu0 0
    %649 = vmatpush2.bf16.msra.mxu0 0
    %650 = vmatprep.subr.bf16.mxu0 0
    %651 = vmatpush2.bf16.msra.mxu0 0
    %652 = vmatprep.subr.bf16.mxu0 0
    %653 = vmatpush2.bf16.msra.mxu0 0
    %654 = vmatprep.mubr.bf16.mxu0 0
    %655 = vmatmul.mubr.bf16.gmra.mxu0 %v113
    %v656 = vpop.f32.mrf.mxu0
    %v657 = vadd.f32 %v199, %v656
    %v658 = vpop.f32.mrf.mxu0
    %v659 = vadd.f32 %v203, %v658
    %v660 = vpop.f32.mrf.mxu0
    %v661 = vpop.f32.mrf.mxu0
    %662 = vdwg.mxu0
    %663 = vmatprep.subr.bf16.mxu0 %v475
    %664 = vmatpush1.bf16.msra.mxu0 %v474
    %665 = vmatprep.subr.bf16.mxu0 %v467
    %666 = vmatpush1.bf16.msra.mxu0 %v466
    %667 = vmatprep.subr.bf16.mxu0 %v459
    %668 = vmatpush1.bf16.msra.mxu0 %v458
    %669 = vmatprep.subr.bf16.mxu0 %v451
    %670 = vmatpush1.bf16.msra.mxu0 %v450
    %671 = vmatprep.subr.bf16.mxu0 %v443
    %672 = vmatpush1.bf16.msra.mxu0 %v442
    %673 = vmatprep.subr.bf16.mxu0 %v435
    %674 = vmatpush1.bf16.msra.mxu0 %v434
    %675 = vmatprep.subr.bf16.mxu0 %v427
    %676 = vmatpush1.bf16.msra.mxu0 %v426
    %677 = vmatprep.subr.bf16.mxu0 %v419
    %678 = vmatpush1.bf16.msra.mxu0 %v418
    %679 = vmatprep.subr.bf16.mxu0 0
    %680 = vmatpush2.bf16.msra.mxu0 0
    %681 = vmatprep.subr.bf16.mxu0 0
    %682 = vmatpush2.bf16.msra.mxu0 0
    %683 = vmatprep.subr.bf16.mxu0 0
    %684 = vmatpush2.bf16.msra.mxu0 0
    %685 = vmatprep.subr.bf16.mxu0 0
    %686 = vmatpush2.bf16.msra.mxu0 0
    %687 = vmatprep.subr.bf16.mxu0 0
    %688 = vmatpush2.bf16.msra.mxu0 0
    %689 = vmatprep.subr.bf16.mxu0 0
    %690 = vmatpush2.bf16.msra.mxu0 0
    %691 = vmatprep.subr.bf16.mxu0 0
    %692 = vmatpush2.bf16.msra.mxu0 0
    %693 = vmatprep.subr.bf16.mxu0 0
    %694 = vmatpush2.bf16.msra.mxu0 0
    %695 = vmatprep.mubr.bf16.mxu0 0
    %696 = vmatmul.mubr.bf16.gmra.mxu0 %v113
    %v697 = vpop.f32.mrf.mxu0
    %v698 = vadd.f32 %v207, %v697
    %v699 = vpop.f32.mrf.mxu0
    %v700 = vadd.f32 %v211, %v699
    %v701 = vpop.f32.mrf.mxu0
    %v702 = vpop.f32.mrf.mxu0
    %703 = vdwg.mxu0
    %v704 = vmax.f32 %v575, 0.0
    %v705 = vmax.f32 %v577, 0.0
    %v706 = vmax.f32 %v616, 0.0
    %v707 = vmax.f32 %v618, 0.0
    %v708 = vmax.f32 %v657, 0.0
    %v709 = vmax.f32 %v659, 0.0
    %v710 = vmax.f32 %v698, 0.0
    %v711 = vmax.f32 %v700, 0.0
    %v712 = vpack.c.bf16 %v704, %v704
    %v713 = vpack.c.bf16 %v705, %v705
    %v714 = vpack.c.bf16 %v706, %v706
    %v715 = vpack.c.bf16 %v707, %v707
    %v716 = vpack.c.bf16 %v708, %v708
    %v717 = vpack.c.bf16 %v709, %v709
    %v718 = vpack.c.bf16 %v710, %v710
    %v719 = vpack.c.bf16 %v711, %v711
    %v720 = vld [vmem:[#allocation8] sm:$0xff]
    %v721 = vld [vmem:[#allocation8 + $0x8] sm:$0xff]
    %v722 = vld [vmem:[#allocation8 + $0x10] sm:$0xff]
    %v723 = vld [vmem:[#allocation8 + $0x18] sm:$0xff]
    %v724 = vld [vmem:[#allocation8 + $0x20] sm:$0xff]
    %v725 = vld [vmem:[#allocation8 + $0x28] sm:$0xff]
    %v726 = vld [vmem:[#allocation8 + $0x30] sm:$0xff]
    %v727 = vld [vmem:[#allocation8 + $0x38] sm:$0xff]
    %v728 = vld [vmem:[#allocation8 + $0x40] sm:$0xff]
    %v729 = vld [vmem:[#allocation8 + $0x48] sm:$0xff]
    %v730 = vld [vmem:[#allocation8 + $0x50] sm:$0xff]
    %v731 = vld [vmem:[#allocation8 + $0x58] sm:$0xff]
    %v732 = vld [vmem:[#allocation8 + $0x60] sm:$0xff]
    %v733 = vld [vmem:[#allocation8 + $0x68] sm:$0xff]
    %v734 = vld [vmem:[#allocation8 + $0x70] sm:$0xff]
    %v735 = vld [vmem:[#allocation8 + $0x78] sm:$0xff]
    %v736 = vld [vmem:[#allocation8 + $0x80] sm:$0xff]
    %v737 = vld [vmem:[#allocation8 + $0x88] sm:$0xff]
    %v738 = vld [vmem:[#allocation8 + $0x90] sm:$0xff]
    %v739 = vld [vmem:[#allocation8 + $0x98] sm:$0xff]
    %v740 = vld [vmem:[#allocation8 + $0xa0] sm:$0xff]
    %v741 = vld [vmem:[#allocation8 + $0xa8] sm:$0xff]
    %v742 = vld [vmem:[#allocation8 + $0xb0] sm:$0xff]
    %v743 = vld [vmem:[#allocation8 + $0xb8] sm:$0xff]
    %v744 = vld [vmem:[#allocation8 + $0xc0] sm:$0xff]
    %v745 = vld [vmem:[#allocation8 + $0xc8] sm:$0xff]
    %v746 = vld [vmem:[#allocation8 + $0xd0] sm:$0xff]
    %v747 = vld [vmem:[#allocation8 + $0xd8] sm:$0xff]
    %v748 = vld [vmem:[#allocation8 + $0xe0] sm:$0xff]
    %v749 = vld [vmem:[#allocation8 + $0xe8] sm:$0xff]
    %v750 = vld [vmem:[#allocation8 + $0xf0] sm:$0xff]
    %v751 = vld [vmem:[#allocation8 + $0xf8] sm:$0xff]
    %v752 = vld [vmem:[#allocation8 + $0x100] sm:$0xff]
    %v753 = vld [vmem:[#allocation8 + $0x108] sm:$0xff]
    %v754 = vld [vmem:[#allocation8 + $0x110] sm:$0xff]
    %v755 = vld [vmem:[#allocation8 + $0x118] sm:$0xff]
    %v756 = vld [vmem:[#allocation8 + $0x120] sm:$0xff]
    %v757 = vld [vmem:[#allocation8 + $0x128] sm:$0xff]
    %v758 = vld [vmem:[#allocation8 + $0x130] sm:$0xff]
    %v759 = vld [vmem:[#allocation8 + $0x138] sm:$0xff]
    %v760 = vld [vmem:[#allocation8 + $0x140] sm:$0xff]
    %v761 = vld [vmem:[#allocation8 + $0x148] sm:$0xff]
    %v762 = vld [vmem:[#allocation8 + $0x150] sm:$0xff]
    %v763 = vld [vmem:[#allocation8 + $0x158] sm:$0xff]
    %v764 = vld [vmem:[#allocation8 + $0x160] sm:$0xff]
    %v765 = vld [vmem:[#allocation8 + $0x168] sm:$0xff]
    %v766 = vld [vmem:[#allocation8 + $0x170] sm:$0xff]
    %v767 = vld [vmem:[#allocation8 + $0x178] sm:$0xff]
    %v768 = vld [vmem:[#allocation8 + $0x180] sm:$0xff]
    %v769 = vld [vmem:[#allocation8 + $0x188] sm:$0xff]
    %v770 = vld [vmem:[#allocation8 + $0x190] sm:$0xff]
    %v771 = vld [vmem:[#allocation8 + $0x198] sm:$0xff]
    %v772 = vld [vmem:[#allocation8 + $0x1a0] sm:$0xff]
    %v773 = vld [vmem:[#allocation8 + $0x1a8] sm:$0xff]
    %v774 = vld [vmem:[#allocation8 + $0x1b0] sm:$0xff]
    %v775 = vld [vmem:[#allocation8 + $0x1b8] sm:$0xff]
    %v776 = vld [vmem:[#allocation8 + $0x1c0] sm:$0xff]
    %v777 = vld [vmem:[#allocation8 + $0x1c8] sm:$0xff]
    %v778 = vld [vmem:[#allocation8 + $0x1d0] sm:$0xff]
    %v779 = vld [vmem:[#allocation8 + $0x1d8] sm:$0xff]
    %v780 = vld [vmem:[#allocation8 + $0x1e0] sm:$0xff]
    %v781 = vld [vmem:[#allocation8 + $0x1e8] sm:$0xff]
    %v782 = vld [vmem:[#allocation8 + $0x1f0] sm:$0xff]
    %v783 = vld [vmem:[#allocation8 + $0x1f8] sm:$0xff]
    %v784 = vld [vmem:[#allocation8 + $0x200] sm:$0xff]
    %v785 = vld [vmem:[#allocation8 + $0x208] sm:$0xff]
    %v786 = vld [vmem:[#allocation8 + $0x210] sm:$0xff]
    %v787 = vld [vmem:[#allocation8 + $0x218] sm:$0xff]
    %v788 = vld [vmem:[#allocation8 + $0x220] sm:$0xff]
    %v789 = vld [vmem:[#allocation8 + $0x228] sm:$0xff]
    %v790 = vld [vmem:[#allocation8 + $0x230] sm:$0xff]
    %v791 = vld [vmem:[#allocation8 + $0x238] sm:$0xff]
    %v792 = vld [vmem:[#allocation8 + $0x240] sm:$0xff]
    %v793 = vld [vmem:[#allocation8 + $0x248] sm:$0xff]
    %v794 = vld [vmem:[#allocation8 + $0x250] sm:$0xff]
    %v795 = vld [vmem:[#allocation8 + $0x258] sm:$0xff]
    %v796 = vld [vmem:[#allocation8 + $0x260] sm:$0xff]
    %v797 = vld [vmem:[#allocation8 + $0x268] sm:$0xff]
    %v798 = vld [vmem:[#allocation8 + $0x270] sm:$0xff]
    %v799 = vld [vmem:[#allocation8 + $0x278] sm:$0xff]
    %v800 = vld [vmem:[#allocation8 + $0x280] sm:$0xff]
    %v801 = vld [vmem:[#allocation8 + $0x288] sm:$0xff]
    %v802 = vld [vmem:[#allocation8 + $0x290] sm:$0xff]
    %v803 = vld [vmem:[#allocation8 + $0x298] sm:$0xff]
    %v804 = vld [vmem:[#allocation8 + $0x2a0] sm:$0xff]
    %v805 = vld [vmem:[#allocation8 + $0x2a8] sm:$0xff]
    %v806 = vld [vmem:[#allocation8 + $0x2b0] sm:$0xff]
    %v807 = vld [vmem:[#allocation8 + $0x2b8] sm:$0xff]
    %v808 = vld [vmem:[#allocation8 + $0x2c0] sm:$0xff]
    %v809 = vld [vmem:[#allocation8 + $0x2c8] sm:$0xff]
    %v810 = vld [vmem:[#allocation8 + $0x2d0] sm:$0xff]
    %v811 = vld [vmem:[#allocation8 + $0x2d8] sm:$0xff]
    %v812 = vld [vmem:[#allocation8 + $0x2e0] sm:$0xff]
    %v813 = vld [vmem:[#allocation8 + $0x2e8] sm:$0xff]
    %v814 = vld [vmem:[#allocation8 + $0x2f0] sm:$0xff]
    %v815 = vld [vmem:[#allocation8 + $0x2f8] sm:$0xff]
    %v816 = vld [vmem:[#allocation8 + $0x300] sm:$0xff]
    %v817 = vld [vmem:[#allocation8 + $0x308] sm:$0xff]
    %v818 = vld [vmem:[#allocation8 + $0x310] sm:$0xff]
    %v819 = vld [vmem:[#allocation8 + $0x318] sm:$0xff]
    %v820 = vld [vmem:[#allocation8 + $0x320] sm:$0xff]
    %v821 = vld [vmem:[#allocation8 + $0x328] sm:$0xff]
    %v822 = vld [vmem:[#allocation8 + $0x330] sm:$0xff]
    %v823 = vld [vmem:[#allocation8 + $0x338] sm:$0xff]
    %v824 = vld [vmem:[#allocation8 + $0x340] sm:$0xff]
    %v825 = vld [vmem:[#allocation8 + $0x348] sm:$0xff]
    %v826 = vld [vmem:[#allocation8 + $0x350] sm:$0xff]
    %v827 = vld [vmem:[#allocation8 + $0x358] sm:$0xff]
    %v828 = vld [vmem:[#allocation8 + $0x360] sm:$0xff]
    %v829 = vld [vmem:[#allocation8 + $0x368] sm:$0xff]
    %v830 = vld [vmem:[#allocation8 + $0x370] sm:$0xff]
    %v831 = vld [vmem:[#allocation8 + $0x378] sm:$0xff]
    %v832 = vld [vmem:[#allocation8 + $0x380] sm:$0xff]
    %v833 = vld [vmem:[#allocation8 + $0x388] sm:$0xff]
    %v834 = vld [vmem:[#allocation8 + $0x390] sm:$0xff]
    %v835 = vld [vmem:[#allocation8 + $0x398] sm:$0xff]
    %v836 = vld [vmem:[#allocation8 + $0x3a0] sm:$0xff]
    %v837 = vld [vmem:[#allocation8 + $0x3a8] sm:$0xff]
    %v838 = vld [vmem:[#allocation8 + $0x3b0] sm:$0xff]
    %v839 = vld [vmem:[#allocation8 + $0x3b8] sm:$0xff]
    %v840 = vld [vmem:[#allocation8 + $0x3c0] sm:$0xff]
    %v841 = vld [vmem:[#allocation8 + $0x3c8] sm:$0xff]
    %v842 = vld [vmem:[#allocation8 + $0x3d0] sm:$0xff]
    %v843 = vld [vmem:[#allocation8 + $0x3d8] sm:$0xff]
    %v844 = vld [vmem:[#allocation8 + $0x3e0] sm:$0xff]
    %v845 = vld [vmem:[#allocation8 + $0x3e8] sm:$0xff]
    %v846 = vld [vmem:[#allocation8 + $0x3f0] sm:$0xff]
    %v847 = vld [vmem:[#allocation8 + $0x3f8] sm:$0xff]
    %v848 = vld [vmem:[%s4] sm:$0xf]
    %v850 = vlaneseq
    %v851 = vshrl.u32 %v850, 7
    %v852 = vsub.s32 0, %v851
    %v853 = vrot.slane %v848, %v852
    %v854 = vlaneseq
    %v855 = vshrl.u32 %v854, 7
    %v856 = vsub.s32 1, %v855
    %v857 = vrot.slane %v848, %v856
    %v858 = vlaneseq
    %v859 = vshrl.u32 %v858, 7
    %v860 = vsub.s32 2, %v859
    %v861 = vrot.slane %v848, %v860
    %v862 = vlaneseq
    %v863 = vshrl.u32 %v862, 7
    %v864 = vsub.s32 3, %v863
    %v865 = vrot.slane %v848, %v864
    %v998 = vunpack.c.l.b16 %v720
    %v999 = vunpack.c.h.b16 %v720
    %v1000 = vunpack.c.l.b16 %v721
    %v1001 = vunpack.c.h.b16 %v721
    %v1002 = vunpack.c.l.b16 %v722
    %v1003 = vunpack.c.h.b16 %v722
    %v1004 = vunpack.c.l.b16 %v723
    %v1005 = vunpack.c.h.b16 %v723
    %v1006 = vunpack.c.l.b16 %v724
    %v1007 = vunpack.c.h.b16 %v724
    %v1008 = vunpack.c.l.b16 %v725
    %v1009 = vunpack.c.h.b16 %v725
    %v1010 = vunpack.c.l.b16 %v726
    %v1011 = vunpack.c.h.b16 %v726
    %v1012 = vunpack.c.l.b16 %v727
    %v1013 = vunpack.c.h.b16 %v727
    %v1014 = vunpack.c.l.b16 %v728
    %v1015 = vunpack.c.h.b16 %v728
    %v1016 = vunpack.c.l.b16 %v729
    %v1017 = vunpack.c.h.b16 %v729
    %v1018 = vunpack.c.l.b16 %v730
    %v1019 = vunpack.c.h.b16 %v730
    %v1020 = vunpack.c.l.b16 %v731
    %v1021 = vunpack.c.h.b16 %v731
    %v1022 = vunpack.c.l.b16 %v732
    %v1023 = vunpack.c.h.b16 %v732
    %v1024 = vunpack.c.l.b16 %v733
    %v1025 = vunpack.c.h.b16 %v733
    %v1026 = vunpack.c.l.b16 %v734
    %v1027 = vunpack.c.h.b16 %v734
    %v1028 = vunpack.c.l.b16 %v735
    %v1029 = vunpack.c.h.b16 %v735
    %v1030 = vunpack.c.l.b16 %v736
    %v1031 = vunpack.c.h.b16 %v736
    %v1032 = vunpack.c.l.b16 %v737
    %v1033 = vunpack.c.h.b16 %v737
    %v1034 = vunpack.c.l.b16 %v738
    %v1035 = vunpack.c.h.b16 %v738
    %v1036 = vunpack.c.l.b16 %v739
    %v1037 = vunpack.c.h.b16 %v739
    %v1038 = vunpack.c.l.b16 %v740
    %v1039 = vunpack.c.h.b16 %v740
    %v1040 = vunpack.c.l.b16 %v741
    %v1041 = vunpack.c.h.b16 %v741
    %v1042 = vunpack.c.l.b16 %v742
    %v1043 = vunpack.c.h.b16 %v742
    %v1044 = vunpack.c.l.b16 %v743
    %v1045 = vunpack.c.h.b16 %v743
    %v1046 = vunpack.c.l.b16 %v744
    %v1047 = vunpack.c.h.b16 %v744
    %v1048 = vunpack.c.l.b16 %v745
    %v1049 = vunpack.c.h.b16 %v745
    %v1050 = vunpack.c.l.b16 %v746
    %v1051 = vunpack.c.h.b16 %v746
    %v1052 = vunpack.c.l.b16 %v747
    %v1053 = vunpack.c.h.b16 %v747
    %v1054 = vunpack.c.l.b16 %v748
    %v1055 = vunpack.c.h.b16 %v748
    %v1056 = vunpack.c.l.b16 %v749
    %v1057 = vunpack.c.h.b16 %v749
    %v1058 = vunpack.c.l.b16 %v750
    %v1059 = vunpack.c.h.b16 %v750
    %v1060 = vunpack.c.l.b16 %v751
    %v1061 = vunpack.c.h.b16 %v751
    %v1062 = vunpack.c.l.b16 %v752
    %v1063 = vunpack.c.h.b16 %v752
    %v1064 = vunpack.c.l.b16 %v753
    %v1065 = vunpack.c.h.b16 %v753
    %v1066 = vunpack.c.l.b16 %v754
    %v1067 = vunpack.c.h.b16 %v754
    %v1068 = vunpack.c.l.b16 %v755
    %v1069 = vunpack.c.h.b16 %v755
    %v1070 = vunpack.c.l.b16 %v756
    %v1071 = vunpack.c.h.b16 %v756
    %v1072 = vunpack.c.l.b16 %v757
    %v1073 = vunpack.c.h.b16 %v757
    %v1074 = vunpack.c.l.b16 %v758
    %v1075 = vunpack.c.h.b16 %v758
    %v1076 = vunpack.c.l.b16 %v759
    %v1077 = vunpack.c.h.b16 %v759
    %v1078 = vunpack.c.l.b16 %v760
    %v1079 = vunpack.c.h.b16 %v760
    %v1080 = vunpack.c.l.b16 %v761
    %v1081 = vunpack.c.h.b16 %v761
    %v1082 = vunpack.c.l.b16 %v762
    %v1083 = vunpack.c.h.b16 %v762
    %v1084 = vunpack.c.l.b16 %v763
    %v1085 = vunpack.c.h.b16 %v763
    %v1086 = vunpack.c.l.b16 %v764
    %v1087 = vunpack.c.h.b16 %v764
    %v1088 = vunpack.c.l.b16 %v765
    %v1089 = vunpack.c.h.b16 %v765
    %v1090 = vunpack.c.l.b16 %v766
    %v1091 = vunpack.c.h.b16 %v766
    %v1092 = vunpack.c.l.b16 %v767
    %v1093 = vunpack.c.h.b16 %v767
    %v1094 = vunpack.c.l.b16 %v768
    %v1095 = vunpack.c.h.b16 %v768
    %v1096 = vunpack.c.l.b16 %v769
    %v1097 = vunpack.c.h.b16 %v769
    %v1098 = vunpack.c.l.b16 %v770
    %v1099 = vunpack.c.h.b16 %v770
    %v1100 = vunpack.c.l.b16 %v771
    %v1101 = vunpack.c.h.b16 %v771
    %v1102 = vunpack.c.l.b16 %v772
    %v1103 = vunpack.c.h.b16 %v772
    %v1104 = vunpack.c.l.b16 %v773
    %v1105 = vunpack.c.h.b16 %v773
    %v1106 = vunpack.c.l.b16 %v774
    %v1107 = vunpack.c.h.b16 %v774
    %v1108 = vunpack.c.l.b16 %v775
    %v1109 = vunpack.c.h.b16 %v775
    %v1110 = vunpack.c.l.b16 %v776
    %v1111 = vunpack.c.h.b16 %v776
    %v1112 = vunpack.c.l.b16 %v777
    %v1113 = vunpack.c.h.b16 %v777
    %v1114 = vunpack.c.l.b16 %v778
    %v1115 = vunpack.c.h.b16 %v778
    %v1116 = vunpack.c.l.b16 %v779
    %v1117 = vunpack.c.h.b16 %v779
    %v1118 = vunpack.c.l.b16 %v780
    %v1119 = vunpack.c.h.b16 %v780
    %v1120 = vunpack.c.l.b16 %v781
    %v1121 = vunpack.c.h.b16 %v781
    %v1122 = vunpack.c.l.b16 %v782
    %v1123 = vunpack.c.h.b16 %v782
    %v1124 = vunpack.c.l.b16 %v783
    %v1125 = vunpack.c.h.b16 %v783
    %v1126 = vunpack.c.l.b16 %v784
    %v1127 = vunpack.c.h.b16 %v784
    %v1128 = vunpack.c.l.b16 %v785
    %v1129 = vunpack.c.h.b16 %v785
    %v1130 = vunpack.c.l.b16 %v786
    %v1131 = vunpack.c.h.b16 %v786
    %v1132 = vunpack.c.l.b16 %v787
    %v1133 = vunpack.c.h.b16 %v787
    %v1134 = vunpack.c.l.b16 %v788
    %v1135 = vunpack.c.h.b16 %v788
    %v1136 = vunpack.c.l.b16 %v789
    %v1137 = vunpack.c.h.b16 %v789
    %v1138 = vunpack.c.l.b16 %v790
    %v1139 = vunpack.c.h.b16 %v790
    %v1140 = vunpack.c.l.b16 %v791
    %v1141 = vunpack.c.h.b16 %v791
    %v1142 = vunpack.c.l.b16 %v792
    %v1143 = vunpack.c.h.b16 %v792
    %v1144 = vunpack.c.l.b16 %v793
    %v1145 = vunpack.c.h.b16 %v793
    %v1146 = vunpack.c.l.b16 %v794
    %v1147 = vunpack.c.h.b16 %v794
    %v1148 = vunpack.c.l.b16 %v795
    %v1149 = vunpack.c.h.b16 %v795
    %v1150 = vunpack.c.l.b16 %v796
    %v1151 = vunpack.c.h.b16 %v796
    %v1152 = vunpack.c.l.b16 %v797
    %v1153 = vunpack.c.h.b16 %v797
    %v1154 = vunpack.c.l.b16 %v798
    %v1155 = vunpack.c.h.b16 %v798
    %v1156 = vunpack.c.l.b16 %v799
    %v1157 = vunpack.c.h.b16 %v799
    %v1158 = vunpack.c.l.b16 %v800
    %v1159 = vunpack.c.h.b16 %v800
    %v1160 = vunpack.c.l.b16 %v801
    %v1161 = vunpack.c.h.b16 %v801
    %v1162 = vunpack.c.l.b16 %v802
    %v1163 = vunpack.c.h.b16 %v802
    %v1164 = vunpack.c.l.b16 %v803
    %v1165 = vunpack.c.h.b16 %v803
    %v1166 = vunpack.c.l.b16 %v804
    %v1167 = vunpack.c.h.b16 %v804
    %v1168 = vunpack.c.l.b16 %v805
    %v1169 = vunpack.c.h.b16 %v805
    %v1170 = vunpack.c.l.b16 %v806
    %v1171 = vunpack.c.h.b16 %v806
    %v1172 = vunpack.c.l.b16 %v807
    %v1173 = vunpack.c.h.b16 %v807
    %v1174 = vunpack.c.l.b16 %v808
    %v1175 = vunpack.c.h.b16 %v808
    %v1176 = vunpack.c.l.b16 %v809
    %v1177 = vunpack.c.h.b16 %v809
    %v1178 = vunpack.c.l.b16 %v810
    %v1179 = vunpack.c.h.b16 %v810
    %v1180 = vunpack.c.l.b16 %v811
    %v1181 = vunpack.c.h.b16 %v811
    %v1182 = vunpack.c.l.b16 %v812
    %v1183 = vunpack.c.h.b16 %v812
    %v1184 = vunpack.c.l.b16 %v813
    %v1185 = vunpack.c.h.b16 %v813
    %v1186 = vunpack.c.l.b16 %v814
    %v1187 = vunpack.c.h.b16 %v814
    %v1188 = vunpack.c.l.b16 %v815
    %v1189 = vunpack.c.h.b16 %v815
    %v1190 = vunpack.c.l.b16 %v816
    %v1191 = vunpack.c.h.b16 %v816
    %v1192 = vunpack.c.l.b16 %v817
    %v1193 = vunpack.c.h.b16 %v817
    %v1194 = vunpack.c.l.b16 %v818
    %v1195 = vunpack.c.h.b16 %v818
    %v1196 = vunpack.c.l.b16 %v819
    %v1197 = vunpack.c.h.b16 %v819
    %v1198 = vunpack.c.l.b16 %v820
    %v1199 = vunpack.c.h.b16 %v820
    %v1200 = vunpack.c.l.b16 %v821
    %v1201 = vunpack.c.h.b16 %v821
    %v1202 = vunpack.c.l.b16 %v822
    %v1203 = vunpack.c.h.b16 %v822
    %v1204 = vunpack.c.l.b16 %v823
    %v1205 = vunpack.c.h.b16 %v823
    %v1206 = vunpack.c.l.b16 %v824
    %v1207 = vunpack.c.h.b16 %v824
    %v1208 = vunpack.c.l.b16 %v825
    %v1209 = vunpack.c.h.b16 %v825
    %v1210 = vunpack.c.l.b16 %v826
    %v1211 = vunpack.c.h.b16 %v826
    %v1212 = vunpack.c.l.b16 %v827
    %v1213 = vunpack.c.h.b16 %v827
    %v1214 = vunpack.c.l.b16 %v828
    %v1215 = vunpack.c.h.b16 %v828
    %v1216 = vunpack.c.l.b16 %v829
    %v1217 = vunpack.c.h.b16 %v829
    %v1218 = vunpack.c.l.b16 %v830
    %v1219 = vunpack.c.h.b16 %v830
    %v1220 = vunpack.c.l.b16 %v831
    %v1221 = vunpack.c.h.b16 %v831
    %v1222 = vunpack.c.l.b16 %v832
    %v1223 = vunpack.c.h.b16 %v832
    %v1224 = vunpack.c.l.b16 %v833
    %v1225 = vunpack.c.h.b16 %v833
    %v1226 = vunpack.c.l.b16 %v834
    %v1227 = vunpack.c.h.b16 %v834
    %v1228 = vunpack.c.l.b16 %v835
    %v1229 = vunpack.c.h.b16 %v835
    %v1230 = vunpack.c.l.b16 %v836
    %v1231 = vunpack.c.h.b16 %v836
    %v1232 = vunpack.c.l.b16 %v837
    %v1233 = vunpack.c.h.b16 %v837
    %v1234 = vunpack.c.l.b16 %v838
    %v1235 = vunpack.c.h.b16 %v838
    %v1236 = vunpack.c.l.b16 %v839
    %v1237 = vunpack.c.h.b16 %v839
    %v1238 = vunpack.c.l.b16 %v840
    %v1239 = vunpack.c.h.b16 %v840
    %v1240 = vunpack.c.l.b16 %v841
    %v1241 = vunpack.c.h.b16 %v841
    %v1242 = vunpack.c.l.b16 %v842
    %v1243 = vunpack.c.h.b16 %v842
    %v1244 = vunpack.c.l.b16 %v843
    %v1245 = vunpack.c.h.b16 %v843
    %v1246 = vunpack.c.l.b16 %v844
    %v1247 = vunpack.c.h.b16 %v844
    %v1248 = vunpack.c.l.b16 %v845
    %v1249 = vunpack.c.h.b16 %v845
    %v1250 = vunpack.c.l.b16 %v846
    %v1251 = vunpack.c.h.b16 %v846
    %v1252 = vunpack.c.l.b16 %v847
    %v1253 = vunpack.c.h.b16 %v847
    %v1254 = vpack.c.b16 %v1002, %v998
    %v1255 = vpack.c.b16 %v1003, %v999
    %v1256 = vpack.c.b16 %v1004, %v1000
    %v1257 = vpack.c.b16 %v1005, %v1001
    %v1258 = vpack.c.b16 %v1010, %v1006
    %v1259 = vpack.c.b16 %v1011, %v1007
    %v1260 = vpack.c.b16 %v1012, %v1008
    %v1261 = vpack.c.b16 %v1013, %v1009
    %v1262 = vpack.c.b16 %v1018, %v1014
    %v1263 = vpack.c.b16 %v1019, %v1015
    %v1264 = vpack.c.b16 %v1020, %v1016
    %v1265 = vpack.c.b16 %v1021, %v1017
    %v1266 = vpack.c.b16 %v1026, %v1022
    %v1267 = vpack.c.b16 %v1027, %v1023
    %v1268 = vpack.c.b16 %v1028, %v1024
    %v1269 = vpack.c.b16 %v1029, %v1025
    %v1270 = vpack.c.b16 %v1034, %v1030
    %v1271 = vpack.c.b16 %v1035, %v1031
    %v1272 = vpack.c.b16 %v1036, %v1032
    %v1273 = vpack.c.b16 %v1037, %v1033
    %v1274 = vpack.c.b16 %v1042, %v1038
    %v1275 = vpack.c.b16 %v1043, %v1039
    %v1276 = vpack.c.b16 %v1044, %v1040
    %v1277 = vpack.c.b16 %v1045, %v1041
    %v1278 = vpack.c.b16 %v1050, %v1046
    %v1279 = vpack.c.b16 %v1051, %v1047
    %v1280 = vpack.c.b16 %v1052, %v1048
    %v1281 = vpack.c.b16 %v1053, %v1049
    %v1282 = vpack.c.b16 %v1058, %v1054
    %v1283 = vpack.c.b16 %v1059, %v1055
    %v1284 = vpack.c.b16 %v1060, %v1056
    %v1285 = vpack.c.b16 %v1061, %v1057
    %v1286 = vpack.c.b16 %v1066, %v1062
    %v1287 = vpack.c.b16 %v1067, %v1063
    %v1288 = vpack.c.b16 %v1068, %v1064
    %v1289 = vpack.c.b16 %v1069, %v1065
    %v1290 = vpack.c.b16 %v1074, %v1070
    %v1291 = vpack.c.b16 %v1075, %v1071
    %v1292 = vpack.c.b16 %v1076, %v1072
    %v1293 = vpack.c.b16 %v1077, %v1073
    %v1294 = vpack.c.b16 %v1082, %v1078
    %v1295 = vpack.c.b16 %v1083, %v1079
    %v1296 = vpack.c.b16 %v1084, %v1080
    %v1297 = vpack.c.b16 %v1085, %v1081
    %v1298 = vpack.c.b16 %v1090, %v1086
    %v1299 = vpack.c.b16 %v1091, %v1087
    %v1300 = vpack.c.b16 %v1092, %v1088
    %v1301 = vpack.c.b16 %v1093, %v1089
    %v1302 = vpack.c.b16 %v1098, %v1094
    %v1303 = vpack.c.b16 %v1099, %v1095
    %v1304 = vpack.c.b16 %v1100, %v1096
    %v1305 = vpack.c.b16 %v1101, %v1097
    %v1306 = vpack.c.b16 %v1106, %v1102
    %v1307 = vpack.c.b16 %v1107, %v1103
    %v1308 = vpack.c.b16 %v1108, %v1104
    %v1309 = vpack.c.b16 %v1109, %v1105
    %v1310 = vpack.c.b16 %v1114, %v1110
    %v1311 = vpack.c.b16 %v1115, %v1111
    %v1312 = vpack.c.b16 %v1116, %v1112
    %v1313 = vpack.c.b16 %v1117, %v1113
    %v1314 = vpack.c.b16 %v1122, %v1118
    %v1315 = vpack.c.b16 %v1123, %v1119
    %v1316 = vpack.c.b16 %v1124, %v1120
    %v1317 = vpack.c.b16 %v1125, %v1121
    %v1318 = vpack.c.b16 %v1130, %v1126
    %v1319 = vpack.c.b16 %v1131, %v1127
    %v1320 = vpack.c.b16 %v1132, %v1128
    %v1321 = vpack.c.b16 %v1133, %v1129
    %v1322 = vpack.c.b16 %v1138, %v1134
    %v1323 = vpack.c.b16 %v1139, %v1135
    %v1324 = vpack.c.b16 %v1140, %v1136
    %v1325 = vpack.c.b16 %v1141, %v1137
    %v1326 = vpack.c.b16 %v1146, %v1142
    %v1327 = vpack.c.b16 %v1147, %v1143
    %v1328 = vpack.c.b16 %v1148, %v1144
    %v1329 = vpack.c.b16 %v1149, %v1145
    %v1330 = vpack.c.b16 %v1154, %v1150
    %v1331 = vpack.c.b16 %v1155, %v1151
    %v1332 = vpack.c.b16 %v1156, %v1152
    %v1333 = vpack.c.b16 %v1157, %v1153
    %v1334 = vpack.c.b16 %v1162, %v1158
    %v1335 = vpack.c.b16 %v1163, %v1159
    %v1336 = vpack.c.b16 %v1164, %v1160
    %v1337 = vpack.c.b16 %v1165, %v1161
    %v1338 = vpack.c.b16 %v1170, %v1166
    %v1339 = vpack.c.b16 %v1171, %v1167
    %v1340 = vpack.c.b16 %v1172, %v1168
    %v1341 = vpack.c.b16 %v1173, %v1169
    %v1342 = vpack.c.b16 %v1178, %v1174
    %v1343 = vpack.c.b16 %v1179, %v1175
    %v1344 = vpack.c.b16 %v1180, %v1176
    %v1345 = vpack.c.b16 %v1181, %v1177
    %v1346 = vpack.c.b16 %v1186, %v1182
    %v1347 = vpack.c.b16 %v1187, %v1183
    %v1348 = vpack.c.b16 %v1188, %v1184
    %v1349 = vpack.c.b16 %v1189, %v1185
    %v1350 = vpack.c.b16 %v1194, %v1190
    %v1351 = vpack.c.b16 %v1195, %v1191
    %v1352 = vpack.c.b16 %v1196, %v1192
    %v1353 = vpack.c.b16 %v1197, %v1193
    %v1354 = vpack.c.b16 %v1202, %v1198
    %v1355 = vpack.c.b16 %v1203, %v1199
    %v1356 = vpack.c.b16 %v1204, %v1200
    %v1357 = vpack.c.b16 %v1205, %v1201
    %v1358 = vpack.c.b16 %v1210, %v1206
    %v1359 = vpack.c.b16 %v1211, %v1207
    %v1360 = vpack.c.b16 %v1212, %v1208
    %v1361 = vpack.c.b16 %v1213, %v1209
    %v1362 = vpack.c.b16 %v1218, %v1214
    %v1363 = vpack.c.b16 %v1219, %v1215
    %v1364 = vpack.c.b16 %v1220, %v1216
    %v1365 = vpack.c.b16 %v1221, %v1217
    %v1366 = vpack.c.b16 %v1226, %v1222
    %v1367 = vpack.c.b16 %v1227, %v1223
    %v1368 = vpack.c.b16 %v1228, %v1224
    %v1369 = vpack.c.b16 %v1229, %v1225
    %v1370 = vpack.c.b16 %v1234, %v1230
    %v1371 = vpack.c.b16 %v1235, %v1231
    %v1372 = vpack.c.b16 %v1236, %v1232
    %v1373 = vpack.c.b16 %v1237, %v1233
    %v1374 = vpack.c.b16 %v1242, %v1238
    %v1375 = vpack.c.b16 %v1243, %v1239
    %v1376 = vpack.c.b16 %v1244, %v1240
    %v1377 = vpack.c.b16 %v1245, %v1241
    %v1378 = vpack.c.b16 %v1250, %v1246
    %v1379 = vpack.c.b16 %v1251, %v1247
    %v1380 = vpack.c.b16 %v1252, %v1248
    %v1381 = vpack.c.b16 %v1253, %v1249
    %1510 = vmatprep.subr.bf16.mxu0 %v1283
    %1511 = vmatpush1.bf16.msra.mxu0 %v1282
    %1512 = vmatprep.subr.bf16.mxu0 %v1279
    %1513 = vmatpush1.bf16.msra.mxu0 %v1278
    %1514 = vmatprep.subr.bf16.mxu0 %v1275
    %1515 = vmatpush1.bf16.msra.mxu0 %v1274
    %1516 = vmatprep.subr.bf16.mxu0 %v1271
    %1517 = vmatpush1.bf16.msra.mxu0 %v1270
    %1518 = vmatprep.subr.bf16.mxu0 %v1267
    %1519 = vmatpush1.bf16.msra.mxu0 %v1266
    %1520 = vmatprep.subr.bf16.mxu0 %v1263
    %1521 = vmatpush1.bf16.msra.mxu0 %v1262
    %1522 = vmatprep.subr.bf16.mxu0 %v1259
    %1523 = vmatpush1.bf16.msra.mxu0 %v1258
    %1524 = vmatprep.subr.bf16.mxu0 %v1255
    %1525 = vmatpush1.bf16.msra.mxu0 %v1254
    %1526 = vmatprep.subr.bf16.mxu0 %v1315
    %1527 = vmatpush2.bf16.msra.mxu0 %v1314
    %1528 = vmatprep.subr.bf16.mxu0 %v1311
    %1529 = vmatpush2.bf16.msra.mxu0 %v1310
    %1530 = vmatprep.subr.bf16.mxu0 %v1307
    %1531 = vmatpush2.bf16.msra.mxu0 %v1306
    %1532 = vmatprep.subr.bf16.mxu0 %v1303
    %1533 = vmatpush2.bf16.msra.mxu0 %v1302
    %1534 = vmatprep.subr.bf16.mxu0 %v1299
    %1535 = vmatpush2.bf16.msra.mxu0 %v1298
    %1536 = vmatprep.subr.bf16.mxu0 %v1295
    %1537 = vmatpush2.bf16.msra.mxu0 %v1294
    %1538 = vmatprep.subr.bf16.mxu0 %v1291
    %1539 = vmatpush2.bf16.msra.mxu0 %v1290
    %1540 = vmatprep.subr.bf16.mxu0 %v1287
    %1541 = vmatpush2.bf16.msra.mxu0 %v1286
    %1542 = vmatprep.mubr.bf16.mxu0 %v713
    %1543 = vmatmul.mubr.bf16.gmra.mxu0 %v712
    %v1544 = vpop.f32.mrf.mxu0
    %v1545 = vadd.f32 %v853, %v1544
    %v1546 = vpop.f32.mrf.mxu0
    %v1547 = vadd.f32 %v857, %v1546
    %v1548 = vpop.f32.mrf.mxu0
    %v1549 = vpop.f32.mrf.mxu0
    %1550 = vdwg.mxu0
    %1551 = vmatprep.subr.bf16.mxu0 %v1347
    %1552 = vmatpush1.bf16.msra.mxu0 %v1346
    %1553 = vmatprep.subr.bf16.mxu0 %v1343
    %1554 = vmatpush1.bf16.msra.mxu0 %v1342
    %1555 = vmatprep.subr.bf16.mxu0 %v1339
    %1556 = vmatpush1.bf16.msra.mxu0 %v1338
    %1557 = vmatprep.subr.bf16.mxu0 %v1335
    %1558 = vmatpush1.bf16.msra.mxu0 %v1334
    %1559 = vmatprep.subr.bf16.mxu0 %v1331
    %1560 = vmatpush1.bf16.msra.mxu0 %v1330
    %1561 = vmatprep.subr.bf16.mxu0 %v1327
    %1562 = vmatpush1.bf16.msra.mxu0 %v1326
    %1563 = vmatprep.subr.bf16.mxu0 %v1323
    %1564 = vmatpush1.bf16.msra.mxu0 %v1322
    %1565 = vmatprep.subr.bf16.mxu0 %v1319
    %1566 = vmatpush1.bf16.msra.mxu0 %v1318
    %1567 = vmatprep.subr.bf16.mxu0 %v1379
    %1568 = vmatpush2.bf16.msra.mxu0 %v1378
    %1569 = vmatprep.subr.bf16.mxu0 %v1375
    %1570 = vmatpush2.bf16.msra.mxu0 %v1374
    %1571 = vmatprep.subr.bf16.mxu0 %v1371
    %1572 = vmatpush2.bf16.msra.mxu0 %v1370
    %1573 = vmatprep.subr.bf16.mxu0 %v1367
    %1574 = vmatpush2.bf16.msra.mxu0 %v1366
    %1575 = vmatprep.subr.bf16.mxu0 %v1363
    %1576 = vmatpush2.bf16.msra.mxu0 %v1362
    %1577 = vmatprep.subr.bf16.mxu0 %v1359
    %1578 = vmatpush2.bf16.msra.mxu0 %v1358
    %1579 = vmatprep.subr.bf16.mxu0 %v1355
    %1580 = vmatpush2.bf16.msra.mxu0 %v1354
    %1581 = vmatprep.subr.bf16.mxu0 %v1351
    %1582 = vmatpush2.bf16.msra.mxu0 %v1350
    %1583 = vmatprep.mubr.bf16.mxu0 %v715
    %1584 = vmatmul.mubr.bf16.gmra.mxu0 %v714
    %v1585 = vpop.f32.mrf.mxu0
    %v1586 = vadd.f32 %v1545, %v1585
    %v1587 = vpop.f32.mrf.mxu0
    %v1588 = vadd.f32 %v1547, %v1587
    %v1589 = vpop.f32.mrf.mxu0
    %v1590 = vpop.f32.mrf.mxu0
    %1591 = vdwg.mxu0
    %1592 = vmatprep.subr.bf16.mxu0 %v1285
    %1593 = vmatpush1.bf16.msra.mxu0 %v1284
    %1594 = vmatprep.subr.bf16.mxu0 %v1281
    %1595 = vmatpush1.bf16.msra.mxu0 %v1280
    %1596 = vmatprep.subr.bf16.mxu0 %v1277
    %1597 = vmatpush1.bf16.msra.mxu0 %v1276
    %1598 = vmatprep.subr.bf16.mxu0 %v1273
    %1599 = vmatpush1.bf16.msra.mxu0 %v1272
    %1600 = vmatprep.subr.bf16.mxu0 %v1269
    %1601 = vmatpush1.bf16.msra.mxu0 %v1268
    %1602 = vmatprep.subr.bf16.mxu0 %v1265
    %1603 = vmatpush1.bf16.msra.mxu0 %v1264
    %1604 = vmatprep.subr.bf16.mxu0 %v1261
    %1605 = vmatpush1.bf16.msra.mxu0 %v1260
    %1606 = vmatprep.subr.bf16.mxu0 %v1257
    %1607 = vmatpush1.bf16.msra.mxu0 %v1256
    %1608 = vmatprep.subr.bf16.mxu0 %v1317
    %1609 = vmatpush2.bf16.msra.mxu0 %v1316
    %1610 = vmatprep.subr.bf16.mxu0 %v1313
    %1611 = vmatpush2.bf16.msra.mxu0 %v1312
    %1612 = vmatprep.subr.bf16.mxu0 %v1309
    %1613 = vmatpush2.bf16.msra.mxu0 %v1308
    %1614 = vmatprep.subr.bf16.mxu0 %v1305
    %1615 = vmatpush2.bf16.msra.mxu0 %v1304
    %1616 = vmatprep.subr.bf16.mxu0 %v1301
    %1617 = vmatpush2.bf16.msra.mxu0 %v1300
    %1618 = vmatprep.subr.bf16.mxu0 %v1297
    %1619 = vmatpush2.bf16.msra.mxu0 %v1296
    %1620 = vmatprep.subr.bf16.mxu0 %v1293
    %1621 = vmatpush2.bf16.msra.mxu0 %v1292
    %1622 = vmatprep.subr.bf16.mxu0 %v1289
    %1623 = vmatpush2.bf16.msra.mxu0 %v1288
    %1624 = vmatprep.mubr.bf16.mxu0 %v713
    %1625 = vmatmul.mubr.bf16.gmra.mxu0 %v712
    %v1626 = vpop.f32.mrf.mxu0
    %v1627 = vadd.f32 %v861, %v1626
    %v1628 = vpop.f32.mrf.mxu0
    %v1629 = vadd.f32 %v865, %v1628
    %v1630 = vpop.f32.mrf.mxu0
    %v1631 = vpop.f32.mrf.mxu0
    %1632 = vdwg.mxu0
    %1633 = vmatprep.subr.bf16.mxu0 %v1349
    %1634 = vmatpush1.bf16.msra.mxu0 %v1348
    %1635 = vmatprep.subr.bf16.mxu0 %v1345
    %1636 = vmatpush1.bf16.msra.mxu0 %v1344
    %1637 = vmatprep.subr.bf16.mxu0 %v1341
    %1638 = vmatpush1.bf16.msra.mxu0 %v1340
    %1639 = vmatprep.subr.bf16.mxu0 %v1337
    %1640 = vmatpush1.bf16.msra.mxu0 %v1336
    %1641 = vmatprep.subr.bf16.mxu0 %v1333
    %1642 = vmatpush1.bf16.msra.mxu0 %v1332
    %1643 = vmatprep.subr.bf16.mxu0 %v1329
    %1644 = vmatpush1.bf16.msra.mxu0 %v1328
    %1645 = vmatprep.subr.bf16.mxu0 %v1325
    %1646 = vmatpush1.bf16.msra.mxu0 %v1324
    %1647 = vmatprep.subr.bf16.mxu0 %v1321
    %1648 = vmatpush1.bf16.msra.mxu0 %v1320
    %1649 = vmatprep.subr.bf16.mxu0 %v1381
    %1650 = vmatpush2.bf16.msra.mxu0 %v1380
    %1651 = vmatprep.subr.bf16.mxu0 %v1377
    %1652 = vmatpush2.bf16.msra.mxu0 %v1376
    %1653 = vmatprep.subr.bf16.mxu0 %v1373
    %1654 = vmatpush2.bf16.msra.mxu0 %v1372
    %1655 = vmatprep.subr.bf16.mxu0 %v1369
    %1656 = vmatpush2.bf16.msra.mxu0 %v1368
    %1657 = vmatprep.subr.bf16.mxu0 %v1365
    %1658 = vmatpush2.bf16.msra.mxu0 %v1364
    %1659 = vmatprep.subr.bf16.mxu0 %v1361
    %1660 = vmatpush2.bf16.msra.mxu0 %v1360
    %1661 = vmatprep.subr.bf16.mxu0 %v1357
    %1662 = vmatpush2.bf16.msra.mxu0 %v1356
    %1663 = vmatprep.subr.bf16.mxu0 %v1353
    %1664 = vmatpush2.bf16.msra.mxu0 %v1352
    %1665 = vmatprep.mubr.bf16.mxu0 %v715
    %1666 = vmatmul.mubr.bf16.gmra.mxu0 %v714
    %v1667 = vpop.f32.mrf.mxu0
    %v1668 = vadd.f32 %v1627, %v1667
    %v1669 = vpop.f32.mrf.mxu0
    %v1670 = vadd.f32 %v1629, %v1669
    %v1671 = vpop.f32.mrf.mxu0
    %v1672 = vpop.f32.mrf.mxu0
    %1673 = vdwg.mxu0
    %v1674 = vmax.f32 %v1586, 0.0
    %v1675 = vmax.f32 %v1588, 0.0
    %v1676 = vmax.f32 %v1668, 0.0
    %v1677 = vmax.f32 %v1670, 0.0
    %v1678 = vld [vmem:[#allocation10] sm:$0xff]
    %v1679 = vld [vmem:[#allocation10 + $0x8] sm:$0xff]
    %v1680 = vld [vmem:[#allocation10 + $0x10] sm:$0xff]
    %v1681 = vld [vmem:[#allocation10 + $0x18] sm:$0xff]
    %v1682 = vld [vmem:[#allocation10 + $0x20] sm:$0xff]
    %v1683 = vld [vmem:[#allocation10 + $0x28] sm:$0xff]
    %v1684 = vld [vmem:[#allocation10 + $0x30] sm:$0xff]
    %v1685 = vld [vmem:[#allocation10 + $0x38] sm:$0xff]
    %v1686 = vld [vmem:[#allocation10 + $0x40] sm:$0xff]
    %v1687 = vld [vmem:[#allocation10 + $0x48] sm:$0xff]
    %v1688 = vld [vmem:[#allocation10 + $0x50] sm:$0xff]
    %v1689 = vld [vmem:[#allocation10 + $0x58] sm:$0xff]
    %v1690 = vld [vmem:[#allocation10 + $0x60] sm:$0xff]
    %v1691 = vld [vmem:[#allocation10 + $0x68] sm:$0xff]
    %v1692 = vld [vmem:[#allocation10 + $0x70] sm:$0xff]
    %v1693 = vld [vmem:[#allocation10 + $0x78] sm:$0xff]
    %v1694 = vld [vmem:[#allocation10 + $0x80] sm:$0xff]
    %v1695 = vld [vmem:[#allocation10 + $0x88] sm:$0xff]
    %v1696 = vld [vmem:[#allocation10 + $0x90] sm:$0xff]
    %v1697 = vld [vmem:[#allocation10 + $0x98] sm:$0xff]
    %v1698 = vld [vmem:[#allocation10 + $0xa0] sm:$0xff]
    %v1699 = vld [vmem:[#allocation10 + $0xa8] sm:$0xff]
    %v1700 = vld [vmem:[#allocation10 + $0xb0] sm:$0xff]
    %v1701 = vld [vmem:[#allocation10 + $0xb8] sm:$0xff]
    %v1702 = vld [vmem:[#allocation10 + $0xc0] sm:$0xff]
    %v1703 = vld [vmem:[#allocation10 + $0xc8] sm:$0xff]
    %v1704 = vld [vmem:[#allocation10 + $0xd0] sm:$0xff]
    %v1705 = vld [vmem:[#allocation10 + $0xd8] sm:$0xff]
    %v1706 = vld [vmem:[#allocation10 + $0xe0] sm:$0xff]
    %v1707 = vld [vmem:[#allocation10 + $0xe8] sm:$0xff]
    %v1708 = vld [vmem:[#allocation10 + $0xf0] sm:$0xff]
    %v1709 = vld [vmem:[#allocation10 + $0xf8] sm:$0xff]
    %v1710 = vld [vmem:[#allocation10 + $0x100] sm:$0xff]
    %v1711 = vld [vmem:[#allocation10 + $0x108] sm:$0xff]
    %v1712 = vld [vmem:[#allocation10 + $0x110] sm:$0xff]
    %v1713 = vld [vmem:[#allocation10 + $0x118] sm:$0xff]
    %v1714 = vld [vmem:[#allocation10 + $0x120] sm:$0xff]
    %v1715 = vld [vmem:[#allocation10 + $0x128] sm:$0xff]
    %v1716 = vld [vmem:[#allocation10 + $0x130] sm:$0xff]
    %v1717 = vld [vmem:[#allocation10 + $0x138] sm:$0xff]
    %v1718 = vld [vmem:[#allocation10 + $0x140] sm:$0xff]
    %v1719 = vld [vmem:[#allocation10 + $0x148] sm:$0xff]
    %v1720 = vld [vmem:[#allocation10 + $0x150] sm:$0xff]
    %v1721 = vld [vmem:[#allocation10 + $0x158] sm:$0xff]
    %v1722 = vld [vmem:[#allocation10 + $0x160] sm:$0xff]
    %v1723 = vld [vmem:[#allocation10 + $0x168] sm:$0xff]
    %v1724 = vld [vmem:[#allocation10 + $0x170] sm:$0xff]
    %v1725 = vld [vmem:[#allocation10 + $0x178] sm:$0xff]
    %v1726 = vld [vmem:[#allocation10 + $0x180] sm:$0xff]
    %v1727 = vld [vmem:[#allocation10 + $0x188] sm:$0xff]
    %v1728 = vld [vmem:[#allocation10 + $0x190] sm:$0xff]
    %v1729 = vld [vmem:[#allocation10 + $0x198] sm:$0xff]
    %v1730 = vld [vmem:[#allocation10 + $0x1a0] sm:$0xff]
    %v1731 = vld [vmem:[#allocation10 + $0x1a8] sm:$0xff]
    %v1732 = vld [vmem:[#allocation10 + $0x1b0] sm:$0xff]
    %v1733 = vld [vmem:[#allocation10 + $0x1b8] sm:$0xff]
    %v1734 = vld [vmem:[#allocation10 + $0x1c0] sm:$0xff]
    %v1735 = vld [vmem:[#allocation10 + $0x1c8] sm:$0xff]
    %v1736 = vld [vmem:[#allocation10 + $0x1d0] sm:$0xff]
    %v1737 = vld [vmem:[#allocation10 + $0x1d8] sm:$0xff]
    %v1738 = vld [vmem:[#allocation10 + $0x1e0] sm:$0xff]
    %v1739 = vld [vmem:[#allocation10 + $0x1e8] sm:$0xff]
    %v1740 = vld [vmem:[#allocation10 + $0x1f0] sm:$0xff]
    %v1741 = vld [vmem:[#allocation10 + $0x1f8] sm:$0xff]
    %v1742 = vld [vmem:[#allocation10 + $0x200] sm:$0xff]
    %v1743 = vld [vmem:[#allocation10 + $0x208] sm:$0xff]
    %v1744 = vld [vmem:[#allocation10 + $0x210] sm:$0xff]
    %v1745 = vld [vmem:[#allocation10 + $0x218] sm:$0xff]
    %v1746 = vld [vmem:[#allocation10 + $0x220] sm:$0xff]
    %v1747 = vld [vmem:[#allocation10 + $0x228] sm:$0xff]
    %v1748 = vld [vmem:[#allocation10 + $0x230] sm:$0xff]
    %v1749 = vld [vmem:[#allocation10 + $0x238] sm:$0xff]
    %v1750 = vld [vmem:[#allocation10 + $0x240] sm:$0xff]
    %v1751 = vld [vmem:[#allocation10 + $0x248] sm:$0xff]
    %v1752 = vld [vmem:[#allocation10 + $0x250] sm:$0xff]
    %v1753 = vld [vmem:[#allocation10 + $0x258] sm:$0xff]
    %v1754 = vld [vmem:[#allocation10 + $0x260] sm:$0xff]
    %v1755 = vld [vmem:[#allocation10 + $0x268] sm:$0xff]
    %v1756 = vld [vmem:[#allocation10 + $0x270] sm:$0xff]
    %v1757 = vld [vmem:[#allocation10 + $0x278] sm:$0xff]
    %v1758 = vld [vmem:[#allocation10 + $0x280] sm:$0xff]
    %v1759 = vld [vmem:[#allocation10 + $0x288] sm:$0xff]
    %v1760 = vld [vmem:[#allocation10 + $0x290] sm:$0xff]
    %v1761 = vld [vmem:[#allocation10 + $0x298] sm:$0xff]
    %v1762 = vld [vmem:[#allocation10 + $0x2a0] sm:$0xff]
    %v1763 = vld [vmem:[#allocation10 + $0x2a8] sm:$0xff]
    %v1764 = vld [vmem:[#allocation10 + $0x2b0] sm:$0xff]
    %v1765 = vld [vmem:[#allocation10 + $0x2b8] sm:$0xff]
    %v1766 = vld [vmem:[#allocation10 + $0x2c0] sm:$0xff]
    %v1767 = vld [vmem:[#allocation10 + $0x2c8] sm:$0xff]
    %v1768 = vld [vmem:[#allocation10 + $0x2d0] sm:$0xff]
    %v1769 = vld [vmem:[#allocation10 + $0x2d8] sm:$0xff]
    %v1770 = vld [vmem:[#allocation10 + $0x2e0] sm:$0xff]
    %v1771 = vld [vmem:[#allocation10 + $0x2e8] sm:$0xff]
    %v1772 = vld [vmem:[#allocation10 + $0x2f0] sm:$0xff]
    %v1773 = vld [vmem:[#allocation10 + $0x2f8] sm:$0xff]
    %v1774 = vld [vmem:[#allocation10 + $0x300] sm:$0xff]
    %v1775 = vld [vmem:[#allocation10 + $0x308] sm:$0xff]
    %v1776 = vld [vmem:[#allocation10 + $0x310] sm:$0xff]
    %v1777 = vld [vmem:[#allocation10 + $0x318] sm:$0xff]
    %v1778 = vld [vmem:[#allocation10 + $0x320] sm:$0xff]
    %v1779 = vld [vmem:[#allocation10 + $0x328] sm:$0xff]
    %v1780 = vld [vmem:[#allocation10 + $0x330] sm:$0xff]
    %v1781 = vld [vmem:[#allocation10 + $0x338] sm:$0xff]
    %v1782 = vld [vmem:[#allocation10 + $0x340] sm:$0xff]
    %v1783 = vld [vmem:[#allocation10 + $0x348] sm:$0xff]
    %v1784 = vld [vmem:[#allocation10 + $0x350] sm:$0xff]
    %v1785 = vld [vmem:[#allocation10 + $0x358] sm:$0xff]
    %v1786 = vld [vmem:[#allocation10 + $0x360] sm:$0xff]
    %v1787 = vld [vmem:[#allocation10 + $0x368] sm:$0xff]
    %v1788 = vld [vmem:[#allocation10 + $0x370] sm:$0xff]
    %v1789 = vld [vmem:[#allocation10 + $0x378] sm:$0xff]
    %v1790 = vld [vmem:[#allocation10 + $0x380] sm:$0xff]
    %v1791 = vld [vmem:[#allocation10 + $0x388] sm:$0xff]
    %v1792 = vld [vmem:[#allocation10 + $0x390] sm:$0xff]
    %v1793 = vld [vmem:[#allocation10 + $0x398] sm:$0xff]
    %v1794 = vld [vmem:[#allocation10 + $0x3a0] sm:$0xff]
    %v1795 = vld [vmem:[#allocation10 + $0x3a8] sm:$0xff]
    %v1796 = vld [vmem:[#allocation10 + $0x3b0] sm:$0xff]
    %v1797 = vld [vmem:[#allocation10 + $0x3b8] sm:$0xff]
    %v1798 = vld [vmem:[#allocation10 + $0x3c0] sm:$0xff]
    %v1799 = vld [vmem:[#allocation10 + $0x3c8] sm:$0xff]
    %v1800 = vld [vmem:[#allocation10 + $0x3d0] sm:$0xff]
    %v1801 = vld [vmem:[#allocation10 + $0x3d8] sm:$0xff]
    %v1802 = vld [vmem:[#allocation10 + $0x3e0] sm:$0xff]
    %v1803 = vld [vmem:[#allocation10 + $0x3e8] sm:$0xff]
    %v1804 = vld [vmem:[#allocation10 + $0x3f0] sm:$0xff]
    %v1805 = vld [vmem:[#allocation10 + $0x3f8] sm:$0xff]
    %v1806 = vld [vmem:[%s6] sm:$0xf]
    %v1808 = vlaneseq
    %v1809 = vshrl.u32 %v1808, 7
    %v1810 = vsub.s32 0, %v1809
    %v1811 = vrot.slane %v1806, %v1810
    %v1812 = vlaneseq
    %v1813 = vshrl.u32 %v1812, 7
    %v1814 = vsub.s32 1, %v1813
    %v1815 = vrot.slane %v1806, %v1814
    %v1816 = vlaneseq
    %v1817 = vshrl.u32 %v1816, 7
    %v1818 = vsub.s32 2, %v1817
    %v1819 = vrot.slane %v1806, %v1818
    %v1820 = vlaneseq
    %v1821 = vshrl.u32 %v1820, 7
    %v1822 = vsub.s32 3, %v1821
    %v1823 = vrot.slane %v1806, %v1822
    %v1956 = vunpack.c.l.b16 %v1678
    %v1957 = vunpack.c.h.b16 %v1678
    %v1958 = vunpack.c.l.b16 %v1679
    %v1959 = vunpack.c.h.b16 %v1679
    %v1960 = vunpack.c.l.b16 %v1680
    %v1961 = vunpack.c.h.b16 %v1680
    %v1962 = vunpack.c.l.b16 %v1681
    %v1963 = vunpack.c.h.b16 %v1681
    %v1964 = vunpack.c.l.b16 %v1682
    %v1965 = vunpack.c.h.b16 %v1682
    %v1966 = vunpack.c.l.b16 %v1683
    %v1967 = vunpack.c.h.b16 %v1683
    %v1968 = vunpack.c.l.b16 %v1684
    %v1969 = vunpack.c.h.b16 %v1684
    %v1970 = vunpack.c.l.b16 %v1685
    %v1971 = vunpack.c.h.b16 %v1685
    %v1972 = vunpack.c.l.b16 %v1686
    %v1973 = vunpack.c.h.b16 %v1686
    %v1974 = vunpack.c.l.b16 %v1687
    %v1975 = vunpack.c.h.b16 %v1687
    %v1976 = vunpack.c.l.b16 %v1688
    %v1977 = vunpack.c.h.b16 %v1688
    %v1978 = vunpack.c.l.b16 %v1689
    %v1979 = vunpack.c.h.b16 %v1689
    %v1980 = vunpack.c.l.b16 %v1690
    %v1981 = vunpack.c.h.b16 %v1690
    %v1982 = vunpack.c.l.b16 %v1691
    %v1983 = vunpack.c.h.b16 %v1691
    %v1984 = vunpack.c.l.b16 %v1692
    %v1985 = vunpack.c.h.b16 %v1692
    %v1986 = vunpack.c.l.b16 %v1693
    %v1987 = vunpack.c.h.b16 %v1693
    %v1988 = vunpack.c.l.b16 %v1694
    %v1989 = vunpack.c.h.b16 %v1694
    %v1990 = vunpack.c.l.b16 %v1695
    %v1991 = vunpack.c.h.b16 %v1695
    %v1992 = vunpack.c.l.b16 %v1696
    %v1993 = vunpack.c.h.b16 %v1696
    %v1994 = vunpack.c.l.b16 %v1697
    %v1995 = vunpack.c.h.b16 %v1697
    %v1996 = vunpack.c.l.b16 %v1698
    %v1997 = vunpack.c.h.b16 %v1698
    %v1998 = vunpack.c.l.b16 %v1699
    %v1999 = vunpack.c.h.b16 %v1699
    %v2000 = vunpack.c.l.b16 %v1700
    %v2001 = vunpack.c.h.b16 %v1700
    %v2002 = vunpack.c.l.b16 %v1701
    %v2003 = vunpack.c.h.b16 %v1701
    %v2004 = vunpack.c.l.b16 %v1702
    %v2005 = vunpack.c.h.b16 %v1702
    %v2006 = vunpack.c.l.b16 %v1703
    %v2007 = vunpack.c.h.b16 %v1703
    %v2008 = vunpack.c.l.b16 %v1704
    %v2009 = vunpack.c.h.b16 %v1704
    %v2010 = vunpack.c.l.b16 %v1705
    %v2011 = vunpack.c.h.b16 %v1705
    %v2012 = vunpack.c.l.b16 %v1706
    %v2013 = vunpack.c.h.b16 %v1706
    %v2014 = vunpack.c.l.b16 %v1707
    %v2015 = vunpack.c.h.b16 %v1707
    %v2016 = vunpack.c.l.b16 %v1708
    %v2017 = vunpack.c.h.b16 %v1708
    %v2018 = vunpack.c.l.b16 %v1709
    %v2019 = vunpack.c.h.b16 %v1709
    %v2020 = vunpack.c.l.b16 %v1710
    %v2021 = vunpack.c.h.b16 %v1710
    %v2022 = vunpack.c.l.b16 %v1711
    %v2023 = vunpack.c.h.b16 %v1711
    %v2024 = vunpack.c.l.b16 %v1712
    %v2025 = vunpack.c.h.b16 %v1712
    %v2026 = vunpack.c.l.b16 %v1713
    %v2027 = vunpack.c.h.b16 %v1713
    %v2028 = vunpack.c.l.b16 %v1714
    %v2029 = vunpack.c.h.b16 %v1714
    %v2030 = vunpack.c.l.b16 %v1715
    %v2031 = vunpack.c.h.b16 %v1715
    %v2032 = vunpack.c.l.b16 %v1716
    %v2033 = vunpack.c.h.b16 %v1716
    %v2034 = vunpack.c.l.b16 %v1717
    %v2035 = vunpack.c.h.b16 %v1717
    %v2036 = vunpack.c.l.b16 %v1718
    %v2037 = vunpack.c.h.b16 %v1718
    %v2038 = vunpack.c.l.b16 %v1719
    %v2039 = vunpack.c.h.b16 %v1719
    %v2040 = vunpack.c.l.b16 %v1720
    %v2041 = vunpack.c.h.b16 %v1720
    %v2042 = vunpack.c.l.b16 %v1721
    %v2043 = vunpack.c.h.b16 %v1721
    %v2044 = vunpack.c.l.b16 %v1722
    %v2045 = vunpack.c.h.b16 %v1722
    %v2046 = vunpack.c.l.b16 %v1723
    %v2047 = vunpack.c.h.b16 %v1723
    %v2048 = vunpack.c.l.b16 %v1724
    %v2049 = vunpack.c.h.b16 %v1724
    %v2050 = vunpack.c.l.b16 %v1725
    %v2051 = vunpack.c.h.b16 %v1725
    %v2052 = vunpack.c.l.b16 %v1726
    %v2053 = vunpack.c.h.b16 %v1726
    %v2054 = vunpack.c.l.b16 %v1727
    %v2055 = vunpack.c.h.b16 %v1727
    %v2056 = vunpack.c.l.b16 %v1728
    %v2057 = vunpack.c.h.b16 %v1728
    %v2058 = vunpack.c.l.b16 %v1729
    %v2059 = vunpack.c.h.b16 %v1729
    %v2060 = vunpack.c.l.b16 %v1730
    %v2061 = vunpack.c.h.b16 %v1730
    %v2062 = vunpack.c.l.b16 %v1731
    %v2063 = vunpack.c.h.b16 %v1731
    %v2064 = vunpack.c.l.b16 %v1732
    %v2065 = vunpack.c.h.b16 %v1732
    %v2066 = vunpack.c.l.b16 %v1733
    %v2067 = vunpack.c.h.b16 %v1733
    %v2068 = vunpack.c.l.b16 %v1734
    %v2069 = vunpack.c.h.b16 %v1734
    %v2070 = vunpack.c.l.b16 %v1735
    %v2071 = vunpack.c.h.b16 %v1735
    %v2072 = vunpack.c.l.b16 %v1736
    %v2073 = vunpack.c.h.b16 %v1736
    %v2074 = vunpack.c.l.b16 %v1737
    %v2075 = vunpack.c.h.b16 %v1737
    %v2076 = vunpack.c.l.b16 %v1738
    %v2077 = vunpack.c.h.b16 %v1738
    %v2078 = vunpack.c.l.b16 %v1739
    %v2079 = vunpack.c.h.b16 %v1739
    %v2080 = vunpack.c.l.b16 %v1740
    %v2081 = vunpack.c.h.b16 %v1740
    %v2082 = vunpack.c.l.b16 %v1741
    %v2083 = vunpack.c.h.b16 %v1741
    %v2084 = vunpack.c.l.b16 %v1742
    %v2085 = vunpack.c.h.b16 %v1742
    %v2086 = vunpack.c.l.b16 %v1743
    %v2087 = vunpack.c.h.b16 %v1743
    %v2088 = vunpack.c.l.b16 %v1744
    %v2089 = vunpack.c.h.b16 %v1744
    %v2090 = vunpack.c.l.b16 %v1745
    %v2091 = vunpack.c.h.b16 %v1745
    %v2092 = vunpack.c.l.b16 %v1746
    %v2093 = vunpack.c.h.b16 %v1746
    %v2094 = vunpack.c.l.b16 %v1747
    %v2095 = vunpack.c.h.b16 %v1747
    %v2096 = vunpack.c.l.b16 %v1748
    %v2097 = vunpack.c.h.b16 %v1748
    %v2098 = vunpack.c.l.b16 %v1749
    %v2099 = vunpack.c.h.b16 %v1749
    %v2100 = vunpack.c.l.b16 %v1750
    %v2101 = vunpack.c.h.b16 %v1750
    %v2102 = vunpack.c.l.b16 %v1751
    %v2103 = vunpack.c.h.b16 %v1751
    %v2104 = vunpack.c.l.b16 %v1752
    %v2105 = vunpack.c.h.b16 %v1752
    %v2106 = vunpack.c.l.b16 %v1753
    %v2107 = vunpack.c.h.b16 %v1753
    %v2108 = vunpack.c.l.b16 %v1754
    %v2109 = vunpack.c.h.b16 %v1754
    %v2110 = vunpack.c.l.b16 %v1755
    %v2111 = vunpack.c.h.b16 %v1755
    %v2112 = vunpack.c.l.b16 %v1756
    %v2113 = vunpack.c.h.b16 %v1756
    %v2114 = vunpack.c.l.b16 %v1757
    %v2115 = vunpack.c.h.b16 %v1757
    %v2116 = vunpack.c.l.b16 %v1758
    %v2117 = vunpack.c.h.b16 %v1758
    %v2118 = vunpack.c.l.b16 %v1759
    %v2119 = vunpack.c.h.b16 %v1759
    %v2120 = vunpack.c.l.b16 %v1760
    %v2121 = vunpack.c.h.b16 %v1760
    %v2122 = vunpack.c.l.b16 %v1761
    %v2123 = vunpack.c.h.b16 %v1761
    %v2124 = vunpack.c.l.b16 %v1762
    %v2125 = vunpack.c.h.b16 %v1762
    %v2126 = vunpack.c.l.b16 %v1763
    %v2127 = vunpack.c.h.b16 %v1763
    %v2128 = vunpack.c.l.b16 %v1764
    %v2129 = vunpack.c.h.b16 %v1764
    %v2130 = vunpack.c.l.b16 %v1765
    %v2131 = vunpack.c.h.b16 %v1765
    %v2132 = vunpack.c.l.b16 %v1766
    %v2133 = vunpack.c.h.b16 %v1766
    %v2134 = vunpack.c.l.b16 %v1767
    %v2135 = vunpack.c.h.b16 %v1767
    %v2136 = vunpack.c.l.b16 %v1768
    %v2137 = vunpack.c.h.b16 %v1768
    %v2138 = vunpack.c.l.b16 %v1769
    %v2139 = vunpack.c.h.b16 %v1769
    %v2140 = vunpack.c.l.b16 %v1770
    %v2141 = vunpack.c.h.b16 %v1770
    %v2142 = vunpack.c.l.b16 %v1771
    %v2143 = vunpack.c.h.b16 %v1771
    %v2144 = vunpack.c.l.b16 %v1772
    %v2145 = vunpack.c.h.b16 %v1772
    %v2146 = vunpack.c.l.b16 %v1773
    %v2147 = vunpack.c.h.b16 %v1773
    %v2148 = vunpack.c.l.b16 %v1774
    %v2149 = vunpack.c.h.b16 %v1774
    %v2150 = vunpack.c.l.b16 %v1775
    %v2151 = vunpack.c.h.b16 %v1775
    %v2152 = vunpack.c.l.b16 %v1776
    %v2153 = vunpack.c.h.b16 %v1776
    %v2154 = vunpack.c.l.b16 %v1777
    %v2155 = vunpack.c.h.b16 %v1777
    %v2156 = vunpack.c.l.b16 %v1778
    %v2157 = vunpack.c.h.b16 %v1778
    %v2158 = vunpack.c.l.b16 %v1779
    %v2159 = vunpack.c.h.b16 %v1779
    %v2160 = vunpack.c.l.b16 %v1780
    %v2161 = vunpack.c.h.b16 %v1780
    %v2162 = vunpack.c.l.b16 %v1781
    %v2163 = vunpack.c.h.b16 %v1781
    %v2164 = vunpack.c.l.b16 %v1782
    %v2165 = vunpack.c.h.b16 %v1782
    %v2166 = vunpack.c.l.b16 %v1783
    %v2167 = vunpack.c.h.b16 %v1783
    %v2168 = vunpack.c.l.b16 %v1784
    %v2169 = vunpack.c.h.b16 %v1784
    %v2170 = vunpack.c.l.b16 %v1785
    %v2171 = vunpack.c.h.b16 %v1785
    %v2172 = vunpack.c.l.b16 %v1786
    %v2173 = vunpack.c.h.b16 %v1786
    %v2174 = vunpack.c.l.b16 %v1787
    %v2175 = vunpack.c.h.b16 %v1787
    %v2176 = vunpack.c.l.b16 %v1788
    %v2177 = vunpack.c.h.b16 %v1788
    %v2178 = vunpack.c.l.b16 %v1789
    %v2179 = vunpack.c.h.b16 %v1789
    %v2180 = vunpack.c.l.b16 %v1790
    %v2181 = vunpack.c.h.b16 %v1790
    %v2182 = vunpack.c.l.b16 %v1791
    %v2183 = vunpack.c.h.b16 %v1791
    %v2184 = vunpack.c.l.b16 %v1792
    %v2185 = vunpack.c.h.b16 %v1792
    %v2186 = vunpack.c.l.b16 %v1793
    %v2187 = vunpack.c.h.b16 %v1793
    %v2188 = vunpack.c.l.b16 %v1794
    %v2189 = vunpack.c.h.b16 %v1794
    %v2190 = vunpack.c.l.b16 %v1795
    %v2191 = vunpack.c.h.b16 %v1795
    %v2192 = vunpack.c.l.b16 %v1796
    %v2193 = vunpack.c.h.b16 %v1796
    %v2194 = vunpack.c.l.b16 %v1797
    %v2195 = vunpack.c.h.b16 %v1797
    %v2196 = vunpack.c.l.b16 %v1798
    %v2197 = vunpack.c.h.b16 %v1798
    %v2198 = vunpack.c.l.b16 %v1799
    %v2199 = vunpack.c.h.b16 %v1799
    %v2200 = vunpack.c.l.b16 %v1800
    %v2201 = vunpack.c.h.b16 %v1800
    %v2202 = vunpack.c.l.b16 %v1801
    %v2203 = vunpack.c.h.b16 %v1801
    %v2204 = vunpack.c.l.b16 %v1802
    %v2205 = vunpack.c.h.b16 %v1802
    %v2206 = vunpack.c.l.b16 %v1803
    %v2207 = vunpack.c.h.b16 %v1803
    %v2208 = vunpack.c.l.b16 %v1804
    %v2209 = vunpack.c.h.b16 %v1804
    %v2210 = vunpack.c.l.b16 %v1805
    %v2211 = vunpack.c.h.b16 %v1805
    %v2212 = vpack.c.b16 %v1960, %v1956
    %v2213 = vpack.c.b16 %v1961, %v1957
    %v2214 = vpack.c.b16 %v1962, %v1958
    %v2215 = vpack.c.b16 %v1963, %v1959
    %v2216 = vpack.c.b16 %v1968, %v1964
    %v2217 = vpack.c.b16 %v1969, %v1965
    %v2218 = vpack.c.b16 %v1970, %v1966
    %v2219 = vpack.c.b16 %v1971, %v1967
    %v2220 = vpack.c.b16 %v1976, %v1972
    %v2221 = vpack.c.b16 %v1977, %v1973
    %v2222 = vpack.c.b16 %v1978, %v1974
    %v2223 = vpack.c.b16 %v1979, %v1975
    %v2224 = vpack.c.b16 %v1984, %v1980
    %v2225 = vpack.c.b16 %v1985, %v1981
    %v2226 = vpack.c.b16 %v1986, %v1982
    %v2227 = vpack.c.b16 %v1987, %v1983
    %v2228 = vpack.c.b16 %v1992, %v1988
    %v2229 = vpack.c.b16 %v1993, %v1989
    %v2230 = vpack.c.b16 %v1994, %v1990
    %v2231 = vpack.c.b16 %v1995, %v1991
    %v2232 = vpack.c.b16 %v2000, %v1996
    %v2233 = vpack.c.b16 %v2001, %v1997
    %v2234 = vpack.c.b16 %v2002, %v1998
    %v2235 = vpack.c.b16 %v2003, %v1999
    %v2236 = vpack.c.b16 %v2008, %v2004
    %v2237 = vpack.c.b16 %v2009, %v2005
    %v2238 = vpack.c.b16 %v2010, %v2006
    %v2239 = vpack.c.b16 %v2011, %v2007
    %v2240 = vpack.c.b16 %v2016, %v2012
    %v2241 = vpack.c.b16 %v2017, %v2013
    %v2242 = vpack.c.b16 %v2018, %v2014
    %v2243 = vpack.c.b16 %v2019, %v2015
    %v2244 = vpack.c.b16 %v2024, %v2020
    %v2245 = vpack.c.b16 %v2025, %v2021
    %v2246 = vpack.c.b16 %v2026, %v2022
    %v2247 = vpack.c.b16 %v2027, %v2023
    %v2248 = vpack.c.b16 %v2032, %v2028
    %v2249 = vpack.c.b16 %v2033, %v2029
    %v2250 = vpack.c.b16 %v2034, %v2030
    %v2251 = vpack.c.b16 %v2035, %v2031
    %v2252 = vpack.c.b16 %v2040, %v2036
    %v2253 = vpack.c.b16 %v2041, %v2037
    %v2254 = vpack.c.b16 %v2042, %v2038
    %v2255 = vpack.c.b16 %v2043, %v2039
    %v2256 = vpack.c.b16 %v2048, %v2044
    %v2257 = vpack.c.b16 %v2049, %v2045
    %v2258 = vpack.c.b16 %v2050, %v2046
    %v2259 = vpack.c.b16 %v2051, %v2047
    %v2260 = vpack.c.b16 %v2056, %v2052
    %v2261 = vpack.c.b16 %v2057, %v2053
    %v2262 = vpack.c.b16 %v2058, %v2054
    %v2263 = vpack.c.b16 %v2059, %v2055
    %v2264 = vpack.c.b16 %v2064, %v2060
    %v2265 = vpack.c.b16 %v2065, %v2061
    %v2266 = vpack.c.b16 %v2066, %v2062
    %v2267 = vpack.c.b16 %v2067, %v2063
    %v2268 = vpack.c.b16 %v2072, %v2068
    %v2269 = vpack.c.b16 %v2073, %v2069
    %v2270 = vpack.c.b16 %v2074, %v2070
    %v2271 = vpack.c.b16 %v2075, %v2071
    %v2272 = vpack.c.b16 %v2080, %v2076
    %v2273 = vpack.c.b16 %v2081, %v2077
    %v2274 = vpack.c.b16 %v2082, %v2078
    %v2275 = vpack.c.b16 %v2083, %v2079
    %v2276 = vpack.c.b16 %v2088, %v2084
    %v2277 = vpack.c.b16 %v2089, %v2085
    %v2278 = vpack.c.b16 %v2090, %v2086
    %v2279 = vpack.c.b16 %v2091, %v2087
    %v2280 = vpack.c.b16 %v2096, %v2092
    %v2281 = vpack.c.b16 %v2097, %v2093
    %v2282 = vpack.c.b16 %v2098, %v2094
    %v2283 = vpack.c.b16 %v2099, %v2095
    %v2284 = vpack.c.b16 %v2104, %v2100
    %v2285 = vpack.c.b16 %v2105, %v2101
    %v2286 = vpack.c.b16 %v2106, %v2102
    %v2287 = vpack.c.b16 %v2107, %v2103
    %v2288 = vpack.c.b16 %v2112, %v2108
    %v2289 = vpack.c.b16 %v2113, %v2109
    %v2290 = vpack.c.b16 %v2114, %v2110
    %v2291 = vpack.c.b16 %v2115, %v2111
    %v2292 = vpack.c.b16 %v2120, %v2116
    %v2293 = vpack.c.b16 %v2121, %v2117
    %v2294 = vpack.c.b16 %v2122, %v2118
    %v2295 = vpack.c.b16 %v2123, %v2119
    %v2296 = vpack.c.b16 %v2128, %v2124
    %v2297 = vpack.c.b16 %v2129, %v2125
    %v2298 = vpack.c.b16 %v2130, %v2126
    %v2299 = vpack.c.b16 %v2131, %v2127
    %v2300 = vpack.c.b16 %v2136, %v2132
    %v2301 = vpack.c.b16 %v2137, %v2133
    %v2302 = vpack.c.b16 %v2138, %v2134
    %v2303 = vpack.c.b16 %v2139, %v2135
    %v2304 = vpack.c.b16 %v2144, %v2140
    %v2305 = vpack.c.b16 %v2145, %v2141
    %v2306 = vpack.c.b16 %v2146, %v2142
    %v2307 = vpack.c.b16 %v2147, %v2143
    %v2308 = vpack.c.b16 %v2152, %v2148
    %v2309 = vpack.c.b16 %v2153, %v2149
    %v2310 = vpack.c.b16 %v2154, %v2150
    %v2311 = vpack.c.b16 %v2155, %v2151
    %v2312 = vpack.c.b16 %v2160, %v2156
    %v2313 = vpack.c.b16 %v2161, %v2157
    %v2314 = vpack.c.b16 %v2162, %v2158
    %v2315 = vpack.c.b16 %v2163, %v2159
    %v2316 = vpack.c.b16 %v2168, %v2164
    %v2317 = vpack.c.b16 %v2169, %v2165
    %v2318 = vpack.c.b16 %v2170, %v2166
    %v2319 = vpack.c.b16 %v2171, %v2167
    %v2320 = vpack.c.b16 %v2176, %v2172
    %v2321 = vpack.c.b16 %v2177, %v2173
    %v2322 = vpack.c.b16 %v2178, %v2174
    %v2323 = vpack.c.b16 %v2179, %v2175
    %v2324 = vpack.c.b16 %v2184, %v2180
    %v2325 = vpack.c.b16 %v2185, %v2181
    %v2326 = vpack.c.b16 %v2186, %v2182
    %v2327 = vpack.c.b16 %v2187, %v2183
    %v2328 = vpack.c.b16 %v2192, %v2188
    %v2329 = vpack.c.b16 %v2193, %v2189
    %v2330 = vpack.c.b16 %v2194, %v2190
    %v2331 = vpack.c.b16 %v2195, %v2191
    %v2332 = vpack.c.b16 %v2200, %v2196
    %v2333 = vpack.c.b16 %v2201, %v2197
    %v2334 = vpack.c.b16 %v2202, %v2198
    %v2335 = vpack.c.b16 %v2203, %v2199
    %v2336 = vpack.c.b16 %v2208, %v2204
    %v2337 = vpack.c.b16 %v2209, %v2205
    %v2338 = vpack.c.b16 %v2210, %v2206
    %v2339 = vpack.c.b16 %v2211, %v2207
    %2468 = vmatprep.subr.bf16.mxu0 %v2241
    %2469 = vmatpush1.bf16.msra.mxu0 %v2240
    %2470 = vmatprep.subr.bf16.mxu0 %v2237
    %2471 = vmatpush1.bf16.msra.mxu0 %v2236
    %2472 = vmatprep.subr.bf16.mxu0 %v2233
    %2473 = vmatpush1.bf16.msra.mxu0 %v2232
    %2474 = vmatprep.subr.bf16.mxu0 %v2229
    %2475 = vmatpush1.bf16.msra.mxu0 %v2228
    %2476 = vmatprep.subr.bf16.mxu0 %v2225
    %2477 = vmatpush1.bf16.msra.mxu0 %v2224
    %2478 = vmatprep.subr.bf16.mxu0 %v2221
    %2479 = vmatpush1.bf16.msra.mxu0 %v2220
    %2480 = vmatprep.subr.bf16.mxu0 %v2217
    %2481 = vmatpush1.bf16.msra.mxu0 %v2216
    %2482 = vmatprep.subr.bf16.mxu0 %v2213
    %2483 = vmatpush1.bf16.msra.mxu0 %v2212
    %2484 = vmatprep.subr.bf16.mxu0 %v2273
    %2485 = vmatpush2.bf16.msra.mxu0 %v2272
    %2486 = vmatprep.subr.bf16.mxu0 %v2269
    %2487 = vmatpush2.bf16.msra.mxu0 %v2268
    %2488 = vmatprep.subr.bf16.mxu0 %v2265
    %2489 = vmatpush2.bf16.msra.mxu0 %v2264
    %2490 = vmatprep.subr.bf16.mxu0 %v2261
    %2491 = vmatpush2.bf16.msra.mxu0 %v2260
    %2492 = vmatprep.subr.bf16.mxu0 %v2257
    %2493 = vmatpush2.bf16.msra.mxu0 %v2256
    %2494 = vmatprep.subr.bf16.mxu0 %v2253
    %2495 = vmatpush2.bf16.msra.mxu0 %v2252
    %2496 = vmatprep.subr.bf16.mxu0 %v2249
    %2497 = vmatpush2.bf16.msra.mxu0 %v2248
    %2498 = vmatprep.subr.bf16.mxu0 %v2245
    %2499 = vmatpush2.bf16.msra.mxu0 %v2244
    %2500 = vmatprep.mubr.bf16.mxu0 %v717
    %2501 = vmatmul.mubr.bf16.gmra.mxu0 %v716
    %v2502 = vpop.f32.mrf.mxu0
    %v2503 = vadd.f32 %v1811, %v2502
    %v2504 = vpop.f32.mrf.mxu0
    %v2505 = vadd.f32 %v1815, %v2504
    %v2506 = vpop.f32.mrf.mxu0
    %v2507 = vpop.f32.mrf.mxu0
    %2508 = vdwg.mxu0
    %2509 = vmatprep.subr.bf16.mxu0 %v2305
    %2510 = vmatpush1.bf16.msra.mxu0 %v2304
    %2511 = vmatprep.subr.bf16.mxu0 %v2301
    %2512 = vmatpush1.bf16.msra.mxu0 %v2300
    %2513 = vmatprep.subr.bf16.mxu0 %v2297
    %2514 = vmatpush1.bf16.msra.mxu0 %v2296
    %2515 = vmatprep.subr.bf16.mxu0 %v2293
    %2516 = vmatpush1.bf16.msra.mxu0 %v2292
    %2517 = vmatprep.subr.bf16.mxu0 %v2289
    %2518 = vmatpush1.bf16.msra.mxu0 %v2288
    %2519 = vmatprep.subr.bf16.mxu0 %v2285
    %2520 = vmatpush1.bf16.msra.mxu0 %v2284
    %2521 = vmatprep.subr.bf16.mxu0 %v2281
    %2522 = vmatpush1.bf16.msra.mxu0 %v2280
    %2523 = vmatprep.subr.bf16.mxu0 %v2277
    %2524 = vmatpush1.bf16.msra.mxu0 %v2276
    %2525 = vmatprep.subr.bf16.mxu0 %v2337
    %2526 = vmatpush2.bf16.msra.mxu0 %v2336
    %2527 = vmatprep.subr.bf16.mxu0 %v2333
    %2528 = vmatpush2.bf16.msra.mxu0 %v2332
    %2529 = vmatprep.subr.bf16.mxu0 %v2329
    %2530 = vmatpush2.bf16.msra.mxu0 %v2328
    %2531 = vmatprep.subr.bf16.mxu0 %v2325
    %2532 = vmatpush2.bf16.msra.mxu0 %v2324
    %2533 = vmatprep.subr.bf16.mxu0 %v2321
    %2534 = vmatpush2.bf16.msra.mxu0 %v2320
    %2535 = vmatprep.subr.bf16.mxu0 %v2317
    %2536 = vmatpush2.bf16.msra.mxu0 %v2316
    %2537 = vmatprep.subr.bf16.mxu0 %v2313
    %2538 = vmatpush2.bf16.msra.mxu0 %v2312
    %2539 = vmatprep.subr.bf16.mxu0 %v2309
    %2540 = vmatpush2.bf16.msra.mxu0 %v2308
    %2541 = vmatprep.mubr.bf16.mxu0 %v719
    %2542 = vmatmul.mubr.bf16.gmra.mxu0 %v718
    %v2543 = vpop.f32.mrf.mxu0
    %v2544 = vadd.f32 %v2503, %v2543
    %v2545 = vpop.f32.mrf.mxu0
    %v2546 = vadd.f32 %v2505, %v2545
    %v2547 = vpop.f32.mrf.mxu0
    %v2548 = vpop.f32.mrf.mxu0
    %2549 = vdwg.mxu0
    %2550 = vmatprep.subr.bf16.mxu0 %v2243
    %2551 = vmatpush1.bf16.msra.mxu0 %v2242
    %2552 = vmatprep.subr.bf16.mxu0 %v2239
    %2553 = vmatpush1.bf16.msra.mxu0 %v2238
    %2554 = vmatprep.subr.bf16.mxu0 %v2235
    %2555 = vmatpush1.bf16.msra.mxu0 %v2234
    %2556 = vmatprep.subr.bf16.mxu0 %v2231
    %2557 = vmatpush1.bf16.msra.mxu0 %v2230
    %2558 = vmatprep.subr.bf16.mxu0 %v2227
    %2559 = vmatpush1.bf16.msra.mxu0 %v2226
    %2560 = vmatprep.subr.bf16.mxu0 %v2223
    %2561 = vmatpush1.bf16.msra.mxu0 %v2222
    %2562 = vmatprep.subr.bf16.mxu0 %v2219
    %2563 = vmatpush1.bf16.msra.mxu0 %v2218
    %2564 = vmatprep.subr.bf16.mxu0 %v2215
    %2565 = vmatpush1.bf16.msra.mxu0 %v2214
    %2566 = vmatprep.subr.bf16.mxu0 %v2275
    %2567 = vmatpush2.bf16.msra.mxu0 %v2274
    %2568 = vmatprep.subr.bf16.mxu0 %v2271
    %2569 = vmatpush2.bf16.msra.mxu0 %v2270
    %2570 = vmatprep.subr.bf16.mxu0 %v2267
    %2571 = vmatpush2.bf16.msra.mxu0 %v2266
    %2572 = vmatprep.subr.bf16.mxu0 %v2263
    %2573 = vmatpush2.bf16.msra.mxu0 %v2262
    %2574 = vmatprep.subr.bf16.mxu0 %v2259
    %2575 = vmatpush2.bf16.msra.mxu0 %v2258
    %2576 = vmatprep.subr.bf16.mxu0 %v2255
    %2577 = vmatpush2.bf16.msra.mxu0 %v2254
    %2578 = vmatprep.subr.bf16.mxu0 %v2251
    %2579 = vmatpush2.bf16.msra.mxu0 %v2250
    %2580 = vmatprep.subr.bf16.mxu0 %v2247
    %2581 = vmatpush2.bf16.msra.mxu0 %v2246
    %2582 = vmatprep.mubr.bf16.mxu0 %v717
    %2583 = vmatmul.mubr.bf16.gmra.mxu0 %v716
    %v2584 = vpop.f32.mrf.mxu0
    %v2585 = vadd.f32 %v1819, %v2584
    %v2586 = vpop.f32.mrf.mxu0
    %v2587 = vadd.f32 %v1823, %v2586
    %v2588 = vpop.f32.mrf.mxu0
    %v2589 = vpop.f32.mrf.mxu0
    %2590 = vdwg.mxu0
    %2591 = vmatprep.subr.bf16.mxu0 %v2307
    %2592 = vmatpush1.bf16.msra.mxu0 %v2306
    %2593 = vmatprep.subr.bf16.mxu0 %v2303
    %2594 = vmatpush1.bf16.msra.mxu0 %v2302
    %2595 = vmatprep.subr.bf16.mxu0 %v2299
    %2596 = vmatpush1.bf16.msra.mxu0 %v2298
    %2597 = vmatprep.subr.bf16.mxu0 %v2295
    %2598 = vmatpush1.bf16.msra.mxu0 %v2294
    %2599 = vmatprep.subr.bf16.mxu0 %v2291
    %2600 = vmatpush1.bf16.msra.mxu0 %v2290
    %2601 = vmatprep.subr.bf16.mxu0 %v2287
    %2602 = vmatpush1.bf16.msra.mxu0 %v2286
    %2603 = vmatprep.subr.bf16.mxu0 %v2283
    %2604 = vmatpush1.bf16.msra.mxu0 %v2282
    %2605 = vmatprep.subr.bf16.mxu0 %v2279
    %2606 = vmatpush1.bf16.msra.mxu0 %v2278
    %2607 = vmatprep.subr.bf16.mxu0 %v2339
    %2608 = vmatpush2.bf16.msra.mxu0 %v2338
    %2609 = vmatprep.subr.bf16.mxu0 %v2335
    %2610 = vmatpush2.bf16.msra.mxu0 %v2334
    %2611 = vmatprep.subr.bf16.mxu0 %v2331
    %2612 = vmatpush2.bf16.msra.mxu0 %v2330
    %2613 = vmatprep.subr.bf16.mxu0 %v2327
    %2614 = vmatpush2.bf16.msra.mxu0 %v2326
    %2615 = vmatprep.subr.bf16.mxu0 %v2323
    %2616 = vmatpush2.bf16.msra.mxu0 %v2322
    %2617 = vmatprep.subr.bf16.mxu0 %v2319
    %2618 = vmatpush2.bf16.msra.mxu0 %v2318
    %2619 = vmatprep.subr.bf16.mxu0 %v2315
    %2620 = vmatpush2.bf16.msra.mxu0 %v2314
    %2621 = vmatprep.subr.bf16.mxu0 %v2311
    %2622 = vmatpush2.bf16.msra.mxu0 %v2310
    %2623 = vmatprep.mubr.bf16.mxu0 %v719
    %2624 = vmatmul.mubr.bf16.gmra.mxu0 %v718
    %v2625 = vpop.f32.mrf.mxu0
    %v2626 = vadd.f32 %v2585, %v2625
    %v2627 = vpop.f32.mrf.mxu0
    %v2628 = vadd.f32 %v2587, %v2627
    %v2629 = vpop.f32.mrf.mxu0
    %v2630 = vpop.f32.mrf.mxu0
    %2631 = vdwg.mxu0
    %v2632 = vmax.f32 %v2544, 0.0
    %v2633 = vmax.f32 %v2546, 0.0
    %v2634 = vmax.f32 %v2626, 0.0
    %v2635 = vmax.f32 %v2628, 0.0
    %v2636 = vpack.c.bf16 %v1674, %v1674
    %v2637 = vpack.c.bf16 %v1675, %v1675
    %v2638 = vpack.c.bf16 %v1676, %v1676
    %v2639 = vpack.c.bf16 %v1677, %v1677
    %v2640 = vpack.c.bf16 %v2632, %v2632
    %v2641 = vpack.c.bf16 %v2633, %v2633
    %v2642 = vpack.c.bf16 %v2634, %v2634
    %v2643 = vpack.c.bf16 %v2635, %v2635
    %v2644 = vld [vmem:[#allocation11] sm:$0xf]
    %v2645 = vld [vmem:[#allocation11 + $0x4] sm:$0xf]
    %v2646 = vld [vmem:[#allocation11 + $0x8] sm:$0xf]
    %v2647 = vld [vmem:[#allocation11 + $0xc] sm:$0xf]
    %v2648 = vld [vmem:[#allocation11 + $0x10] sm:$0xf]
    %v2649 = vld [vmem:[#allocation11 + $0x14] sm:$0xf]
    %v2650 = vld [vmem:[#allocation11 + $0x18] sm:$0xf]
    %v2651 = vld [vmem:[#allocation11 + $0x1c] sm:$0xf]
    %v2652 = vld [vmem:[#allocation11 + $0x20] sm:$0xf]
    %v2653 = vld [vmem:[#allocation11 + $0x24] sm:$0xf]
    %v2654 = vld [vmem:[#allocation11 + $0x28] sm:$0xf]
    %v2655 = vld [vmem:[#allocation11 + $0x2c] sm:$0xf]
    %v2656 = vld [vmem:[#allocation11 + $0x30] sm:$0xf]
    %v2657 = vld [vmem:[#allocation11 + $0x34] sm:$0xf]
    %v2658 = vld [vmem:[#allocation11 + $0x38] sm:$0xf]
    %v2659 = vld [vmem:[#allocation11 + $0x3c] sm:$0xf]
    %v2660 = vld [vmem:[#allocation11 + $0x40] sm:$0xf]
    %v2661 = vld [vmem:[#allocation11 + $0x44] sm:$0xf]
    %v2662 = vld [vmem:[#allocation11 + $0x48] sm:$0xf]
    %v2663 = vld [vmem:[#allocation11 + $0x4c] sm:$0xf]
    %v2664 = vld [vmem:[#allocation11 + $0x50] sm:$0xf]
    %v2665 = vld [vmem:[#allocation11 + $0x54] sm:$0xf]
    %v2666 = vld [vmem:[#allocation11 + $0x58] sm:$0xf]
    %v2667 = vld [vmem:[#allocation11 + $0x5c] sm:$0xf]
    %v2668 = vld [vmem:[#allocation11 + $0x60] sm:$0xf]
    %v2669 = vld [vmem:[#allocation11 + $0x64] sm:$0xf]
    %v2670 = vld [vmem:[#allocation11 + $0x68] sm:$0xf]
    %v2671 = vld [vmem:[#allocation11 + $0x6c] sm:$0xf]
    %v2672 = vld [vmem:[#allocation11 + $0x70] sm:$0xf]
    %v2673 = vld [vmem:[#allocation11 + $0x74] sm:$0xf]
    %v2674 = vld [vmem:[#allocation11 + $0x78] sm:$0xf]
    %v2675 = vld [vmem:[#allocation11 + $0x7c] sm:$0xf]
    %v2676 = vld [vmem:[#allocation11 + $0x80] sm:$0xf]
    %v2677 = vld [vmem:[#allocation11 + $0x84] sm:$0xf]
    %v2678 = vld [vmem:[#allocation11 + $0x88] sm:$0xf]
    %v2679 = vld [vmem:[#allocation11 + $0x8c] sm:$0xf]
    %v2680 = vld [vmem:[#allocation11 + $0x90] sm:$0xf]
    %v2681 = vld [vmem:[#allocation11 + $0x94] sm:$0xf]
    %v2682 = vld [vmem:[#allocation11 + $0x98] sm:$0xf]
    %v2683 = vld [vmem:[#allocation11 + $0x9c] sm:$0xf]
    %v2684 = vld [vmem:[#allocation11 + $0xa0] sm:$0xf]
    %v2685 = vld [vmem:[#allocation11 + $0xa4] sm:$0xf]
    %v2686 = vld [vmem:[#allocation11 + $0xa8] sm:$0xf]
    %v2687 = vld [vmem:[#allocation11 + $0xac] sm:$0xf]
    %v2688 = vld [vmem:[#allocation11 + $0xb0] sm:$0xf]
    %v2689 = vld [vmem:[#allocation11 + $0xb4] sm:$0xf]
    %v2690 = vld [vmem:[#allocation11 + $0xb8] sm:$0xf]
    %v2691 = vld [vmem:[#allocation11 + $0xbc] sm:$0xf]
    %v2692 = vld [vmem:[#allocation11 + $0xc0] sm:$0xf]
    %v2693 = vld [vmem:[#allocation11 + $0xc4] sm:$0xf]
    %v2694 = vld [vmem:[#allocation11 + $0xc8] sm:$0xf]
    %v2695 = vld [vmem:[#allocation11 + $0xcc] sm:$0xf]
    %v2696 = vld [vmem:[#allocation11 + $0xd0] sm:$0xf]
    %v2697 = vld [vmem:[#allocation11 + $0xd4] sm:$0xf]
    %v2698 = vld [vmem:[#allocation11 + $0xd8] sm:$0xf]
    %v2699 = vld [vmem:[#allocation11 + $0xdc] sm:$0xf]
    %v2700 = vld [vmem:[#allocation11 + $0xe0] sm:$0xf]
    %v2701 = vld [vmem:[#allocation11 + $0xe4] sm:$0xf]
    %v2702 = vld [vmem:[#allocation11 + $0xe8] sm:$0xf]
    %v2703 = vld [vmem:[#allocation11 + $0xec] sm:$0xf]
    %v2704 = vld [vmem:[#allocation11 + $0xf0] sm:$0xf]
    %v2705 = vld [vmem:[#allocation11 + $0xf4] sm:$0xf]
    %v2706 = vld [vmem:[#allocation11 + $0xf8] sm:$0xf]
    %v2707 = vld [vmem:[#allocation11 + $0xfc] sm:$0xf]
    %v2708 = vld [vmem:[#allocation11 + $0x100] sm:$0xf]
    %v2709 = vld [vmem:[#allocation11 + $0x104] sm:$0xf]
    %v2710 = vld [vmem:[#allocation11 + $0x108] sm:$0xf]
    %v2711 = vld [vmem:[#allocation11 + $0x10c] sm:$0xf]
    %v2712 = vld [vmem:[#allocation11 + $0x110] sm:$0xf]
    %v2713 = vld [vmem:[#allocation11 + $0x114] sm:$0xf]
    %v2714 = vld [vmem:[#allocation11 + $0x118] sm:$0xf]
    %v2715 = vld [vmem:[#allocation11 + $0x11c] sm:$0xf]
    %v2716 = vld [vmem:[#allocation11 + $0x120] sm:$0xf]
    %v2717 = vld [vmem:[#allocation11 + $0x124] sm:$0xf]
    %v2718 = vld [vmem:[#allocation11 + $0x128] sm:$0xf]
    %v2719 = vld [vmem:[#allocation11 + $0x12c] sm:$0xf]
    %v2720 = vld [vmem:[#allocation11 + $0x130] sm:$0xf]
    %v2721 = vld [vmem:[#allocation11 + $0x134] sm:$0xf]
    %v2722 = vld [vmem:[#allocation11 + $0x138] sm:$0xf]
    %v2723 = vld [vmem:[#allocation11 + $0x13c] sm:$0xf]
    %v2724 = vld [vmem:[#allocation11 + $0x140] sm:$0xf]
    %v2725 = vld [vmem:[#allocation11 + $0x144] sm:$0xf]
    %v2726 = vld [vmem:[#allocation11 + $0x148] sm:$0xf]
    %v2727 = vld [vmem:[#allocation11 + $0x14c] sm:$0xf]
    %v2728 = vld [vmem:[#allocation11 + $0x150] sm:$0xf]
    %v2729 = vld [vmem:[#allocation11 + $0x154] sm:$0xf]
    %v2730 = vld [vmem:[#allocation11 + $0x158] sm:$0xf]
    %v2731 = vld [vmem:[#allocation11 + $0x15c] sm:$0xf]
    %v2732 = vld [vmem:[#allocation11 + $0x160] sm:$0xf]
    %v2733 = vld [vmem:[#allocation11 + $0x164] sm:$0xf]
    %v2734 = vld [vmem:[#allocation11 + $0x168] sm:$0xf]
    %v2735 = vld [vmem:[#allocation11 + $0x16c] sm:$0xf]
    %v2736 = vld [vmem:[#allocation11 + $0x170] sm:$0xf]
    %v2737 = vld [vmem:[#allocation11 + $0x174] sm:$0xf]
    %v2738 = vld [vmem:[#allocation11 + $0x178] sm:$0xf]
    %v2739 = vld [vmem:[#allocation11 + $0x17c] sm:$0xf]
    %v2740 = vld [vmem:[#allocation11 + $0x180] sm:$0xf]
    %v2741 = vld [vmem:[#allocation11 + $0x184] sm:$0xf]
    %v2742 = vld [vmem:[#allocation11 + $0x188] sm:$0xf]
    %v2743 = vld [vmem:[#allocation11 + $0x18c] sm:$0xf]
    %v2744 = vld [vmem:[#allocation11 + $0x190] sm:$0xf]
    %v2745 = vld [vmem:[#allocation11 + $0x194] sm:$0xf]
    %v2746 = vld [vmem:[#allocation11 + $0x198] sm:$0xf]
    %v2747 = vld [vmem:[#allocation11 + $0x19c] sm:$0xf]
    %v2748 = vld [vmem:[#allocation11 + $0x1a0] sm:$0xf]
    %v2749 = vld [vmem:[#allocation11 + $0x1a4] sm:$0xf]
    %v2750 = vld [vmem:[#allocation11 + $0x1a8] sm:$0xf]
    %v2751 = vld [vmem:[#allocation11 + $0x1ac] sm:$0xf]
    %v2752 = vld [vmem:[#allocation11 + $0x1b0] sm:$0xf]
    %v2753 = vld [vmem:[#allocation11 + $0x1b4] sm:$0xf]
    %v2754 = vld [vmem:[#allocation11 + $0x1b8] sm:$0xf]
    %v2755 = vld [vmem:[#allocation11 + $0x1bc] sm:$0xf]
    %v2756 = vld [vmem:[#allocation11 + $0x1c0] sm:$0xf]
    %v2757 = vld [vmem:[#allocation11 + $0x1c4] sm:$0xf]
    %v2758 = vld [vmem:[#allocation11 + $0x1c8] sm:$0xf]
    %v2759 = vld [vmem:[#allocation11 + $0x1cc] sm:$0xf]
    %v2760 = vld [vmem:[#allocation11 + $0x1d0] sm:$0xf]
    %v2761 = vld [vmem:[#allocation11 + $0x1d4] sm:$0xf]
    %v2762 = vld [vmem:[#allocation11 + $0x1d8] sm:$0xf]
    %v2763 = vld [vmem:[#allocation11 + $0x1dc] sm:$0xf]
    %v2764 = vld [vmem:[#allocation11 + $0x1e0] sm:$0xf]
    %v2765 = vld [vmem:[#allocation11 + $0x1e4] sm:$0xf]
    %v2766 = vld [vmem:[#allocation11 + $0x1e8] sm:$0xf]
    %v2767 = vld [vmem:[#allocation11 + $0x1ec] sm:$0xf]
    %v2768 = vld [vmem:[#allocation11 + $0x1f0] sm:$0xf]
    %v2769 = vld [vmem:[#allocation11 + $0x1f4] sm:$0xf]
    %v2770 = vld [vmem:[#allocation11 + $0x1f8] sm:$0xf]
    %v2771 = vld [vmem:[#allocation11 + $0x1fc] sm:$0xf]
    %v2772 = vld [vmem:[%s8] sm:$0x1]
    %v2774 = vlaneseq
    %v2775 = vshrl.u32 %v2774, 7
    %v2776 = vsub.s32 0, %v2775
    %v2777 = vrot.slane %v2772, %v2776
    %v2907 = vunpack.c.l.b16 %v2644
    %v2908 = vunpack.c.l.b16 %v2645
    %v2909 = vunpack.c.l.b16 %v2646
    %v2910 = vunpack.c.l.b16 %v2647
    %v2911 = vunpack.c.l.b16 %v2648
    %v2912 = vunpack.c.l.b16 %v2649
    %v2913 = vunpack.c.l.b16 %v2650
    %v2914 = vunpack.c.l.b16 %v2651
    %v2915 = vunpack.c.l.b16 %v2652
    %v2916 = vunpack.c.l.b16 %v2653
    %v2917 = vunpack.c.l.b16 %v2654
    %v2918 = vunpack.c.l.b16 %v2655
    %v2919 = vunpack.c.l.b16 %v2656
    %v2920 = vunpack.c.l.b16 %v2657
    %v2921 = vunpack.c.l.b16 %v2658
    %v2922 = vunpack.c.l.b16 %v2659
    %v2923 = vunpack.c.l.b16 %v2660
    %v2924 = vunpack.c.l.b16 %v2661
    %v2925 = vunpack.c.l.b16 %v2662
    %v2926 = vunpack.c.l.b16 %v2663
    %v2927 = vunpack.c.l.b16 %v2664
    %v2928 = vunpack.c.l.b16 %v2665
    %v2929 = vunpack.c.l.b16 %v2666
    %v2930 = vunpack.c.l.b16 %v2667
    %v2931 = vunpack.c.l.b16 %v2668
    %v2932 = vunpack.c.l.b16 %v2669
    %v2933 = vunpack.c.l.b16 %v2670
    %v2934 = vunpack.c.l.b16 %v2671
    %v2935 = vunpack.c.l.b16 %v2672
    %v2936 = vunpack.c.l.b16 %v2673
    %v2937 = vunpack.c.l.b16 %v2674
    %v2938 = vunpack.c.l.b16 %v2675
    %v2939 = vunpack.c.l.b16 %v2676
    %v2940 = vunpack.c.l.b16 %v2677
    %v2941 = vunpack.c.l.b16 %v2678
    %v2942 = vunpack.c.l.b16 %v2679
    %v2943 = vunpack.c.l.b16 %v2680
    %v2944 = vunpack.c.l.b16 %v2681
    %v2945 = vunpack.c.l.b16 %v2682
    %v2946 = vunpack.c.l.b16 %v2683
    %v2947 = vunpack.c.l.b16 %v2684
    %v2948 = vunpack.c.l.b16 %v2685
    %v2949 = vunpack.c.l.b16 %v2686
    %v2950 = vunpack.c.l.b16 %v2687
    %v2951 = vunpack.c.l.b16 %v2688
    %v2952 = vunpack.c.l.b16 %v2689
    %v2953 = vunpack.c.l.b16 %v2690
    %v2954 = vunpack.c.l.b16 %v2691
    %v2955 = vunpack.c.l.b16 %v2692
    %v2956 = vunpack.c.l.b16 %v2693
    %v2957 = vunpack.c.l.b16 %v2694
    %v2958 = vunpack.c.l.b16 %v2695
    %v2959 = vunpack.c.l.b16 %v2696
    %v2960 = vunpack.c.l.b16 %v2697
    %v2961 = vunpack.c.l.b16 %v2698
    %v2962 = vunpack.c.l.b16 %v2699
    %v2963 = vunpack.c.l.b16 %v2700
    %v2964 = vunpack.c.l.b16 %v2701
    %v2965 = vunpack.c.l.b16 %v2702
    %v2966 = vunpack.c.l.b16 %v2703
    %v2967 = vunpack.c.l.b16 %v2704
    %v2968 = vunpack.c.l.b16 %v2705
    %v2969 = vunpack.c.l.b16 %v2706
    %v2970 = vunpack.c.l.b16 %v2707
    %v2971 = vunpack.c.l.b16 %v2708
    %v2972 = vunpack.c.l.b16 %v2709
    %v2973 = vunpack.c.l.b16 %v2710
    %v2974 = vunpack.c.l.b16 %v2711
    %v2975 = vunpack.c.l.b16 %v2712
    %v2976 = vunpack.c.l.b16 %v2713
    %v2977 = vunpack.c.l.b16 %v2714
    %v2978 = vunpack.c.l.b16 %v2715
    %v2979 = vunpack.c.l.b16 %v2716
    %v2980 = vunpack.c.l.b16 %v2717
    %v2981 = vunpack.c.l.b16 %v2718
    %v2982 = vunpack.c.l.b16 %v2719
    %v2983 = vunpack.c.l.b16 %v2720
    %v2984 = vunpack.c.l.b16 %v2721
    %v2985 = vunpack.c.l.b16 %v2722
    %v2986 = vunpack.c.l.b16 %v2723
    %v2987 = vunpack.c.l.b16 %v2724
    %v2988 = vunpack.c.l.b16 %v2725
    %v2989 = vunpack.c.l.b16 %v2726
    %v2990 = vunpack.c.l.b16 %v2727
    %v2991 = vunpack.c.l.b16 %v2728
    %v2992 = vunpack.c.l.b16 %v2729
    %v2993 = vunpack.c.l.b16 %v2730
    %v2994 = vunpack.c.l.b16 %v2731
    %v2995 = vunpack.c.l.b16 %v2732
    %v2996 = vunpack.c.l.b16 %v2733
    %v2997 = vunpack.c.l.b16 %v2734
    %v2998 = vunpack.c.l.b16 %v2735
    %v2999 = vunpack.c.l.b16 %v2736
    %v3000 = vunpack.c.l.b16 %v2737
    %v3001 = vunpack.c.l.b16 %v2738
    %v3002 = vunpack.c.l.b16 %v2739
    %v3003 = vunpack.c.l.b16 %v2740
    %v3004 = vunpack.c.l.b16 %v2741
    %v3005 = vunpack.c.l.b16 %v2742
    %v3006 = vunpack.c.l.b16 %v2743
    %v3007 = vunpack.c.l.b16 %v2744
    %v3008 = vunpack.c.l.b16 %v2745
    %v3009 = vunpack.c.l.b16 %v2746
    %v3010 = vunpack.c.l.b16 %v2747
    %v3011 = vunpack.c.l.b16 %v2748
    %v3012 = vunpack.c.l.b16 %v2749
    %v3013 = vunpack.c.l.b16 %v2750
    %v3014 = vunpack.c.l.b16 %v2751
    %v3015 = vunpack.c.l.b16 %v2752
    %v3016 = vunpack.c.l.b16 %v2753
    %v3017 = vunpack.c.l.b16 %v2754
    %v3018 = vunpack.c.l.b16 %v2755
    %v3019 = vunpack.c.l.b16 %v2756
    %v3020 = vunpack.c.l.b16 %v2757
    %v3021 = vunpack.c.l.b16 %v2758
    %v3022 = vunpack.c.l.b16 %v2759
    %v3023 = vunpack.c.l.b16 %v2760
    %v3024 = vunpack.c.l.b16 %v2761
    %v3025 = vunpack.c.l.b16 %v2762
    %v3026 = vunpack.c.l.b16 %v2763
    %v3027 = vunpack.c.l.b16 %v2764
    %v3028 = vunpack.c.l.b16 %v2765
    %v3029 = vunpack.c.l.b16 %v2766
    %v3030 = vunpack.c.l.b16 %v2767
    %v3031 = vunpack.c.l.b16 %v2768
    %v3032 = vunpack.c.l.b16 %v2769
    %v3033 = vunpack.c.l.b16 %v2770
    %v3034 = vunpack.c.l.b16 %v2771
    %v3035 = vpack.c.b16 %v2908, %v2907
    %v3036 = vpack.c.b16 %v2910, %v2909
    %v3037 = vpack.c.b16 %v2912, %v2911
    %v3038 = vpack.c.b16 %v2914, %v2913
    %v3039 = vpack.c.b16 %v2916, %v2915
    %v3040 = vpack.c.b16 %v2918, %v2917
    %v3041 = vpack.c.b16 %v2920, %v2919
    %v3042 = vpack.c.b16 %v2922, %v2921
    %v3043 = vpack.c.b16 %v2924, %v2923
    %v3044 = vpack.c.b16 %v2926, %v2925
    %v3045 = vpack.c.b16 %v2928, %v2927
    %v3046 = vpack.c.b16 %v2930, %v2929
    %v3047 = vpack.c.b16 %v2932, %v2931
    %v3048 = vpack.c.b16 %v2934, %v2933
    %v3049 = vpack.c.b16 %v2936, %v2935
    %v3050 = vpack.c.b16 %v2938, %v2937
    %v3051 = vpack.c.b16 %v2940, %v2939
    %v3052 = vpack.c.b16 %v2942, %v2941
    %v3053 = vpack.c.b16 %v2944, %v2943
    %v3054 = vpack.c.b16 %v2946, %v2945
    %v3055 = vpack.c.b16 %v2948, %v2947
    %v3056 = vpack.c.b16 %v2950, %v2949
    %v3057 = vpack.c.b16 %v2952, %v2951
    %v3058 = vpack.c.b16 %v2954, %v2953
    %v3059 = vpack.c.b16 %v2956, %v2955
    %v3060 = vpack.c.b16 %v2958, %v2957
    %v3061 = vpack.c.b16 %v2960, %v2959
    %v3062 = vpack.c.b16 %v2962, %v2961
    %v3063 = vpack.c.b16 %v2964, %v2963
    %v3064 = vpack.c.b16 %v2966, %v2965
    %v3065 = vpack.c.b16 %v2968, %v2967
    %v3066 = vpack.c.b16 %v2970, %v2969
    %v3067 = vpack.c.b16 %v2972, %v2971
    %v3068 = vpack.c.b16 %v2974, %v2973
    %v3069 = vpack.c.b16 %v2976, %v2975
    %v3070 = vpack.c.b16 %v2978, %v2977
    %v3071 = vpack.c.b16 %v2980, %v2979
    %v3072 = vpack.c.b16 %v2982, %v2981
    %v3073 = vpack.c.b16 %v2984, %v2983
    %v3074 = vpack.c.b16 %v2986, %v2985
    %v3075 = vpack.c.b16 %v2988, %v2987
    %v3076 = vpack.c.b16 %v2990, %v2989
    %v3077 = vpack.c.b16 %v2992, %v2991
    %v3078 = vpack.c.b16 %v2994, %v2993
    %v3079 = vpack.c.b16 %v2996, %v2995
    %v3080 = vpack.c.b16 %v2998, %v2997
    %v3081 = vpack.c.b16 %v3000, %v2999
    %v3082 = vpack.c.b16 %v3002, %v3001
    %v3083 = vpack.c.b16 %v3004, %v3003
    %v3084 = vpack.c.b16 %v3006, %v3005
    %v3085 = vpack.c.b16 %v3008, %v3007
    %v3086 = vpack.c.b16 %v3010, %v3009
    %v3087 = vpack.c.b16 %v3012, %v3011
    %v3088 = vpack.c.b16 %v3014, %v3013
    %v3089 = vpack.c.b16 %v3016, %v3015
    %v3090 = vpack.c.b16 %v3018, %v3017
    %v3091 = vpack.c.b16 %v3020, %v3019
    %v3092 = vpack.c.b16 %v3022, %v3021
    %v3093 = vpack.c.b16 %v3024, %v3023
    %v3094 = vpack.c.b16 %v3026, %v3025
    %v3095 = vpack.c.b16 %v3028, %v3027
    %v3096 = vpack.c.b16 %v3030, %v3029
    %v3097 = vpack.c.b16 %v3032, %v3031
    %v3098 = vpack.c.b16 %v3034, %v3033
    %3163 = vmatprep.subr.bf16.mxu0 0
    %3164 = vmatpush1.bf16.msra.mxu0 %v3042
    %3165 = vmatprep.subr.bf16.mxu0 0
    %3166 = vmatpush1.bf16.msra.mxu0 %v3041
    %3167 = vmatprep.subr.bf16.mxu0 0
    %3168 = vmatpush1.bf16.msra.mxu0 %v3040
    %3169 = vmatprep.subr.bf16.mxu0 0
    %3170 = vmatpush1.bf16.msra.mxu0 %v3039
    %3171 = vmatprep.subr.bf16.mxu0 0
    %3172 = vmatpush1.bf16.msra.mxu0 %v3038
    %3173 = vmatprep.subr.bf16.mxu0 0
    %3174 = vmatpush1.bf16.msra.mxu0 %v3037
    %3175 = vmatprep.subr.bf16.mxu0 0
    %3176 = vmatpush1.bf16.msra.mxu0 %v3036
    %3177 = vmatprep.subr.bf16.mxu0 0
    %3178 = vmatpush1.bf16.msra.mxu0 %v3035
    %3179 = vmatprep.subr.bf16.mxu0 0
    %3180 = vmatpush2.bf16.msra.mxu0 %v3050
    %3181 = vmatprep.subr.bf16.mxu0 0
    %3182 = vmatpush2.bf16.msra.mxu0 %v3049
    %3183 = vmatprep.subr.bf16.mxu0 0
    %3184 = vmatpush2.bf16.msra.mxu0 %v3048
    %3185 = vmatprep.subr.bf16.mxu0 0
    %3186 = vmatpush2.bf16.msra.mxu0 %v3047
    %3187 = vmatprep.subr.bf16.mxu0 0
    %3188 = vmatpush2.bf16.msra.mxu0 %v3046
    %3189 = vmatprep.subr.bf16.mxu0 0
    %3190 = vmatpush2.bf16.msra.mxu0 %v3045
    %3191 = vmatprep.subr.bf16.mxu0 0
    %3192 = vmatpush2.bf16.msra.mxu0 %v3044
    %3193 = vmatprep.subr.bf16.mxu0 0
    %3194 = vmatpush2.bf16.msra.mxu0 %v3043
    %3195 = vmatprep.mubr.bf16.mxu0 %v2637
    %3196 = vmatmul.mubr.bf16.gmra.mxu0 %v2636
    %v3197 = vpop.f32.mrf.mxu0
    %v3198 = vadd.f32 %v2777, %v3197
    %v3199 = vpop.f32.mrf.mxu0
    %v3200 = vpop.f32.mrf.mxu0
    %v3201 = vpop.f32.mrf.mxu0
    %3202 = vdwg.mxu0
    %3203 = vmatprep.subr.bf16.mxu0 0
    %3204 = vmatpush1.bf16.msra.mxu0 %v3058
    %3205 = vmatprep.subr.bf16.mxu0 0
    %3206 = vmatpush1.bf16.msra.mxu0 %v3057
    %3207 = vmatprep.subr.bf16.mxu0 0
    %3208 = vmatpush1.bf16.msra.mxu0 %v3056
    %3209 = vmatprep.subr.bf16.mxu0 0
    %3210 = vmatpush1.bf16.msra.mxu0 %v3055
    %3211 = vmatprep.subr.bf16.mxu0 0
    %3212 = vmatpush1.bf16.msra.mxu0 %v3054
    %3213 = vmatprep.subr.bf16.mxu0 0
    %3214 = vmatpush1.bf16.msra.mxu0 %v3053
    %3215 = vmatprep.subr.bf16.mxu0 0
    %3216 = vmatpush1.bf16.msra.mxu0 %v3052
    %3217 = vmatprep.subr.bf16.mxu0 0
    %3218 = vmatpush1.bf16.msra.mxu0 %v3051
    %3219 = vmatprep.subr.bf16.mxu0 0
    %3220 = vmatpush2.bf16.msra.mxu0 %v3066
    %3221 = vmatprep.subr.bf16.mxu0 0
    %3222 = vmatpush2.bf16.msra.mxu0 %v3065
    %3223 = vmatprep.subr.bf16.mxu0 0
    %3224 = vmatpush2.bf16.msra.mxu0 %v3064
    %3225 = vmatprep.subr.bf16.mxu0 0
    %3226 = vmatpush2.bf16.msra.mxu0 %v3063
    %3227 = vmatprep.subr.bf16.mxu0 0
    %3228 = vmatpush2.bf16.msra.mxu0 %v3062
    %3229 = vmatprep.subr.bf16.mxu0 0
    %3230 = vmatpush2.bf16.msra.mxu0 %v3061
    %3231 = vmatprep.subr.bf16.mxu0 0
    %3232 = vmatpush2.bf16.msra.mxu0 %v3060
    %3233 = vmatprep.subr.bf16.mxu0 0
    %3234 = vmatpush2.bf16.msra.mxu0 %v3059
    %3235 = vmatprep.mubr.bf16.mxu0 %v2639
    %3236 = vmatmul.mubr.bf16.gmra.mxu0 %v2638
    %v3237 = vpop.f32.mrf.mxu0
    %v3238 = vadd.f32 %v3198, %v3237
    %v3239 = vpop.f32.mrf.mxu0
    %v3240 = vpop.f32.mrf.mxu0
    %v3241 = vpop.f32.mrf.mxu0
    %3242 = vdwg.mxu0
    %3243 = vmatprep.subr.bf16.mxu0 0
    %3244 = vmatpush1.bf16.msra.mxu0 %v3074
    %3245 = vmatprep.subr.bf16.mxu0 0
    %3246 = vmatpush1.bf16.msra.mxu0 %v3073
    %3247 = vmatprep.subr.bf16.mxu0 0
    %3248 = vmatpush1.bf16.msra.mxu0 %v3072
    %3249 = vmatprep.subr.bf16.mxu0 0
    %3250 = vmatpush1.bf16.msra.mxu0 %v3071
    %3251 = vmatprep.subr.bf16.mxu0 0
    %3252 = vmatpush1.bf16.msra.mxu0 %v3070
    %3253 = vmatprep.subr.bf16.mxu0 0
    %3254 = vmatpush1.bf16.msra.mxu0 %v3069
    %3255 = vmatprep.subr.bf16.mxu0 0
    %3256 = vmatpush1.bf16.msra.mxu0 %v3068
    %3257 = vmatprep.subr.bf16.mxu0 0
    %3258 = vmatpush1.bf16.msra.mxu0 %v3067
    %3259 = vmatprep.subr.bf16.mxu0 0
    %3260 = vmatpush2.bf16.msra.mxu0 %v3082
    %3261 = vmatprep.subr.bf16.mxu0 0
    %3262 = vmatpush2.bf16.msra.mxu0 %v3081
    %3263 = vmatprep.subr.bf16.mxu0 0
    %3264 = vmatpush2.bf16.msra.mxu0 %v3080
    %3265 = vmatprep.subr.bf16.mxu0 0
    %3266 = vmatpush2.bf16.msra.mxu0 %v3079
    %3267 = vmatprep.subr.bf16.mxu0 0
    %3268 = vmatpush2.bf16.msra.mxu0 %v3078
    %3269 = vmatprep.subr.bf16.mxu0 0
    %3270 = vmatpush2.bf16.msra.mxu0 %v3077
    %3271 = vmatprep.subr.bf16.mxu0 0
    %3272 = vmatpush2.bf16.msra.mxu0 %v3076
    %3273 = vmatprep.subr.bf16.mxu0 0
    %3274 = vmatpush2.bf16.msra.mxu0 %v3075
    %3275 = vmatprep.mubr.bf16.mxu0 %v2641
    %3276 = vmatmul.mubr.bf16.gmra.mxu0 %v2640
    %v3277 = vpop.f32.mrf.mxu0
    %v3278 = vadd.f32 %v3238, %v3277
    %v3279 = vpop.f32.mrf.mxu0
    %v3280 = vpop.f32.mrf.mxu0
    %v3281 = vpop.f32.mrf.mxu0
    %3282 = vdwg.mxu0
    %3283 = vmatprep.subr.bf16.mxu0 0
    %3284 = vmatpush1.bf16.msra.mxu0 %v3090
    %3285 = vmatprep.subr.bf16.mxu0 0
    %3286 = vmatpush1.bf16.msra.mxu0 %v3089
    %3287 = vmatprep.subr.bf16.mxu0 0
    %3288 = vmatpush1.bf16.msra.mxu0 %v3088
    %3289 = vmatprep.subr.bf16.mxu0 0
    %3290 = vmatpush1.bf16.msra.mxu0 %v3087
    %3291 = vmatprep.subr.bf16.mxu0 0
    %3292 = vmatpush1.bf16.msra.mxu0 %v3086
    %3293 = vmatprep.subr.bf16.mxu0 0
    %3294 = vmatpush1.bf16.msra.mxu0 %v3085
    %3295 = vmatprep.subr.bf16.mxu0 0
    %3296 = vmatpush1.bf16.msra.mxu0 %v3084
    %3297 = vmatprep.subr.bf16.mxu0 0
    %3298 = vmatpush1.bf16.msra.mxu0 %v3083
    %3299 = vmatprep.subr.bf16.mxu0 0
    %3300 = vmatpush2.bf16.msra.mxu0 %v3098
    %3301 = vmatprep.subr.bf16.mxu0 0
    %3302 = vmatpush2.bf16.msra.mxu0 %v3097
    %3303 = vmatprep.subr.bf16.mxu0 0
    %3304 = vmatpush2.bf16.msra.mxu0 %v3096
    %3305 = vmatprep.subr.bf16.mxu0 0
    %3306 = vmatpush2.bf16.msra.mxu0 %v3095
    %3307 = vmatprep.subr.bf16.mxu0 0
    %3308 = vmatpush2.bf16.msra.mxu0 %v3094
    %3309 = vmatprep.subr.bf16.mxu0 0
    %3310 = vmatpush2.bf16.msra.mxu0 %v3093
    %3311 = vmatprep.subr.bf16.mxu0 0
    %3312 = vmatpush2.bf16.msra.mxu0 %v3092
    %3313 = vmatprep.subr.bf16.mxu0 0
    %3314 = vmatpush2.bf16.msra.mxu0 %v3091
    %3315 = vmatprep.mubr.bf16.mxu0 %v2643
    %3316 = vmatmul.mubr.bf16.gmra.mxu0 %v2642
    %v3317 = vpop.f32.mrf.mxu0
    %v3318 = vadd.f32 %v3278, %v3317
    %v3319 = vpop.f32.mrf.mxu0
    %v3320 = vpop.f32.mrf.mxu0
    %v3321 = vpop.f32.mrf.mxu0
    %3322 = vdwg.mxu0
    %3323 = vst [vmem:[#allocation13] sm:$0xff] %v3318
    // Predicated region
    $region62: #{tpu_custom_call.1} parent=1 // pred_check
      _
    $region63: #{tpu_custom_call.1} parent=1 // pred_check_branch
      %3325 = sbr.rel (0) target = $region65
    $region64: #{tpu_custom_call.1} parent=1 // pred_region
      %s3327 = ssub.s32 128, 128
      %3328 = vsyncadd [#allocation4], %s3327
      %s3330 = sshll.u32 [#allocation13], 4
      %s3331 = int_to_ptr.vmem [resolvable:$true] %s3330
      %3333 = dma.vmem_to_hbm [thread:$0]  %s3331, 128, %s9, [#allocation4]
    $region65: #{tpu_custom_call.1} parent=1 // pred_fallthru
      _
    // Predicated region
    $region66: #{tpu_custom_call.1} parent=1 // pred_check
      _
    $region67: #{tpu_custom_call.1} parent=1 // pred_check_branch
      %3335 = sbr.rel (0) target = $region69
    $region68: #{tpu_custom_call.1} parent=1 // pred_region
      %3336 = dma.done [#allocation4], 128
    $region69: #{tpu_custom_call.1} parent=1 // pred_fallthru
      _
    %3337 = vsyncpa [#allocation3], 1
    %3338 = vsyncpa [#allocation6], 1
    %3339 = vsyncpa [#allocation9], 1
    %3340 = vsyncpa [#allocation12], 1
    %3341 = vsyncpa [#allocation4], 1

</llo_original>
